<compile_context>
chip_gen: v7x
topology: tpu7x:2x2x1
jax: 0.10.0
libtpu: 0.0.40
codegen_flags: <defaults>
</compile_context>

<pallas_src>
import functools

import jax
import jax.numpy as jnp
import numpy as np
from jax.experimental import pallas as pl
from jax.experimental.pallas import tpu as pltpu


def _round_up(x, m):
    return ((x + m - 1) // m) * m


def _interp_kernel(x_ref, w1_ref, b1_ref, w2_ref, b2_ref, o_ref, *, use_bf16_exp):
    """One batch tile: full ensemble forward, written once to o_ref.

    Per-grid-step shapes:
      x_ref : (M, TB, D)   bf16
      w1_ref: (M, D, Hp)   bf16   (H zero-padded to 128)
      b1_ref: (M, Hp)      f32
      w2_ref: (M, Hp, O)   bf16   (padded H rows are zero)
      b2_ref: (M, O)       f32
      o_ref : (TB, O)      f32    (narrow writeback; O == true class count)
    """
    n_models = x_ref.shape[0]
    b1 = b1_ref[...]
    b2 = b2_ref[...]

    psum = None
    # Static unroll over the (small) ensemble: clean 2-D MXU matmuls per model,
    # single (TB, O) f32 live accumulator (keeps vreg/VMEM pressure low).
    for m in range(n_models):
        x = x_ref[m]                                       # (TB, D)   bf16
        h = jnp.dot(x, w1_ref[m], preferred_element_type=jnp.float32)
        h = jnp.maximum(h + b1[m:m + 1, :], 0.0)           # fc1 + relu, f32
        z = jnp.dot(h.astype(jnp.bfloat16), w2_ref[m],
                    preferred_element_type=jnp.float32)
        z = z + b2[m:m + 1, :]                             # fc2 logits, (TB, O)

        # exp(log_softmax(z)) == softmax(z), numerically stable.
        mx = jnp.max(z, axis=-1, keepdims=True)
        zc = z - mx
        if use_bf16_exp:     # v6e/v7x: bf16 EUP path (~2x transcendental throughput)
            e = jnp.exp(zc.astype(jnp.bfloat16)).astype(jnp.float32)
        else:                # v5e: no bf16 EUP -> keep f32 (avoid useless casts)
            e = jnp.exp(zc)
        s = jnp.sum(e, axis=-1, keepdims=True)
        r = pl.reciprocal(s, approx=True)                  # EUP slot
        r = r * (2.0 - s * r)                              # one Newton step -> ~f32 accuracy
        p = e * r                                          # per-model softmax probs

        psum = p if psum is None else psum + p

    # Ensemble: log( mean_m p_m ), written straight to the narrow output block.
    o_ref[...] = jnp.log(psum * (1.0 / float(n_models)))


def prepare_params(params):
    """One-time parameter cast/pad (hoisted out of the forward path)."""
    emb, w1, b1, w2, b2 = params
    n_models, _vocab, E = emb.shape
    D = 3 * E
    H = w1.shape[-1]
    O = w2.shape[-1]
    H_pad = _round_up(H, 128)
    return {
        "emb": emb.astype(jnp.bfloat16),
        "w1": jnp.pad(w1.astype(jnp.bfloat16), ((0, 0), (0, 0), (0, H_pad - H))),
        "b1": jnp.pad(b1.reshape(n_models, H).astype(jnp.float32),
                      ((0, 0), (0, H_pad - H))),
        "w2": jnp.pad(w2.astype(jnp.bfloat16), ((0, 0), (0, H_pad - H), (0, 0))),
        "b2": b2.reshape(n_models, O).astype(jnp.float32),
        "dims": (n_models, E, D, H, H_pad, O),
    }


def _weight_vmem_bytes(n_models, D, H_pad, O):
    # Approximate VMEM footprint of the (single-buffered) constant operands,
    # accounting for lane/sublane padding.
    Ov = _round_up(max(O, 1), 128)
    return (n_models * (_round_up(D, 16) * H_pad * 2        # w1 bf16
                        + _round_up(H_pad, 16) * Ov * 2)     # w2 bf16
            + _round_up(n_models, 8) * (H_pad + Ov) * 4)     # b1, b2 f32


def _choose_batch_tile(B, n_models, D, O, vmem_budget, weight_vmem):
    """Largest batch tile that fits the VMEM budget (double-buffered x/out +
    single-buffered weights), capped so the grid keeps >= 2 programs once the
    batch allows it (so both v7x TensorCores are used)."""
    Dv = _round_up(D, 128)
    Ov = _round_up(max(O, 1), 128)
    per_row = 2 * n_models * Dv * 2 + 2 * Ov * 4     # dbl-buffered x (bf16) + out (f32)
    avail = max(vmem_budget - weight_vmem - (4 << 20), 1 << 20)
    tb = max(8, min(1024, (avail // per_row) // 8 * 8))
    half = _round_up(max((B + 1) // 2, 1), 8)        # >= 2 programs when B permits
    return int(min(tb, half))


def model_interpolation_forward(words, features, prepared):
    """words: (B, 3) int32 token ids; features: unused (NERNN.forward ignores it)."""
    del features
    n_models, E, D, H, H_pad, O = prepared["dims"]
    B, ctx = words.shape
    assert ctx * E == D, "expected 3-word windows matching embedding_dim*3"

    # Per-generation knobs (conservative defaults if the kind string is unknown).
    kind = jax.devices()[0].device_kind.lower()
    use_bf16_exp = ("v6" in kind) or ("v7" in kind)
    vmem_budget = (96 << 20) if (("v5" in kind) or ("v6" in kind)) else (40 << 20)

    # ---- glue (plain JAX): embedding gather in bf16 ----
    # TODO(synk): fuse the gather into the kernel (scalar-prefetched word ids +
    #             per-row DMA) to avoid materializing x in HBM at production sizes.
    x = prepared["emb"][:, words.reshape(-1), :].reshape(n_models, B, D)

    weight_vmem = _weight_vmem_bytes(n_models, D, H_pad, O)
    TB = _choose_batch_tile(B, n_models, D, O, vmem_budget, weight_vmem)
    B_pad = _round_up(B, TB)
    if B_pad != B:
        x = jnp.pad(x, ((0, 0), (0, B_pad - B), (0, 0)))
    grid = (B_pad // TB,)

    # vmem limit derived from actual block sizes for this generation.
    x_block = n_models * TB * _round_up(D, 128) * 2
    out_block = TB * _round_up(O, 128) * 4
    vmem_limit = int(min(vmem_budget,
                         max(2 * x_block + 2 * out_block + weight_vmem + (4 << 20),
                             16 << 20)))

    cost = pl.CostEstimate(
        flops=2 * n_models * B_pad * (D * H_pad + H_pad * O),
        transcendentals=n_models * B_pad * O,
        bytes_accessed=int(x.size * 2 + prepared["w1"].size * 2
                           + prepared["w2"].size * 2 + prepared["b1"].size * 4
                           + prepared["b2"].size * 4 + B_pad * O * 4),
    )

    kernel = functools.partial(_interp_kernel, use_bf16_exp=use_bf16_exp)

    def build_and_run(single_buffer_weights):
        const_kw = ({"pipeline_mode": pl.Buffered(1)} if single_buffer_weights else {})
        in_specs = [
            pl.BlockSpec((n_models, TB, D), lambda i: (0, i, 0)),                  # x
            pl.BlockSpec((n_models, D, H_pad), lambda i: (0, 0, 0), **const_kw),   # w1
            pl.BlockSpec((n_models, H_pad), lambda i: (0, 0), **const_kw),         # b1
            pl.BlockSpec((n_models, H_pad, O), lambda i: (0, 0, 0), **const_kw),   # w2
            pl.BlockSpec((n_models, O), lambda i: (0, 0), **const_kw),             # b2
        ]
        out = pl.pallas_call(
            kernel,
            out_shape=jax.ShapeDtypeStruct((B_pad, O), jnp.float32),
            grid_spec=pltpu.PrefetchScalarGridSpec(
                num_scalar_prefetch=0,
                grid=grid,
                in_specs=in_specs,
                out_specs=pl.BlockSpec((TB, O), lambda i: (i, 0)),
            ),
            compiler_params=pltpu.CompilerParams(
                dimension_semantics=("parallel",),
                vmem_limit_bytes=vmem_limit,
            ),
            cost_estimate=cost,
        )(x, prepared["w1"], prepared["b1"], prepared["w2"], prepared["b2"])
        return jax.block_until_ready(out)

    try:
        out_padded = build_and_run(True)
    except Exception:
        # Fallback for Pallas builds without pipeline_mode support on the
        # top-level pallas_call (weights then use the default double buffer).
        out_padded = build_and_run(False)

    return out_padded[:B]


def init_params(key, n_models, vocab_size, embedding_dim, hidden_dim, output_size):
    """Deterministic synthetic parameters for the ensemble of NERNN models."""
    D = embedding_dim * 3
    k = jax.random.split(key, 5)
    emb = 0.1 * jax.random.normal(k[0], (n_models, vocab_size, embedding_dim), jnp.float32)
    emb = emb.at[:, 0, :].set(0.0)  # padding_idx=0 -> embedding row 0 is zeros
    w1 = 0.1 * jax.random.normal(k[1], (n_models, D, hidden_dim), jnp.float32)
    b1 = 0.1 * jax.random.normal(k[2], (n_models, 1, hidden_dim), jnp.float32)
    w2 = 0.1 * jax.random.normal(k[3], (n_models, hidden_dim, output_size), jnp.float32)
    b2 = 0.1 * jax.random.normal(k[4], (n_models, 1, output_size), jnp.float32)
    return emb, w1, b1, w2, b2


def _reference_forward(words, params):
    """Pure-JAX f32 reference of ModelInterpolation.forward for verification."""
    emb_tables, w1, b1, w2, b2 = params
    n_models = emb_tables.shape[0]
    B, ctx = words.shape
    E = emb_tables.shape[-1]
    ysum = 0.0
    for m in range(n_models):
        x = emb_tables[m][words.reshape(-1)].reshape(B, ctx * E)
        h = jax.nn.relu(x @ w1[m] + b1[m])
        z = h @ w2[m] + b2[m]
        ysum = ysum + jnp.exp(jax.nn.log_softmax(z, axis=1))
    return jnp.log(ysum / n_models)


if __name__ == "__main__":
    # Small, deterministic example shapes (multi-tile grid: TB=16 -> 2 programs).
    n_models = 3
    vocab_size = 64
    embedding_dim = 16     # -> fc1 input = 48
    hidden_dim = 32
    output_size = 8
    batch = 32
    ctx = 3                # NERNN consumes 3-word windows (view(-1, embedding_dim*3))

    key = jax.random.PRNGKey(0)
    k_params, k_words, k_feat = jax.random.split(key, 3)

    raw_params = init_params(k_params, n_models, vocab_size, embedding_dim,
                             hidden_dim, output_size)
    prepared = prepare_params(raw_params)   # hoisted one-time cast/pad
    words = jax.random.randint(k_words, (batch, ctx), 0, vocab_size, dtype=jnp.int32)
    features = jax.random.normal(k_feat, (batch, 4), jnp.float32)  # ignored by forward

    out = model_interpolation_forward(words, features, prepared)
    out = jax.block_until_ready(out)

    ref = _reference_forward(words, raw_params)
    # Tolerance reflects bf16 MXU inputs / bf16 exp (f32 accumulation); any
    # structural error would be O(1), observed deviation is ~1e-3.
    np.testing.assert_allclose(np.asarray(out), np.asarray(ref), rtol=2e-2, atol=2e-2)

    print("KERNEL_OK")
</pallas_src>

<mosaic_0001>
module attributes {stable_mosaic.version = 11 : i64} {
  func.func @_interp_kernel(%arg0: i32, %arg1: memref<3x16x48xbf16, #tpu.memory_space<vmem>>, %arg2: memref<3x48x128xbf16, #tpu.memory_space<vmem>>, %arg3: memref<3x128xf32, #tpu.memory_space<vmem>>, %arg4: memref<3x128x8xbf16, #tpu.memory_space<vmem>>, %arg5: memref<3x8xf32, #tpu.memory_space<vmem>>, %arg6: memref<16x8xf32, #tpu.memory_space<vmem>>) attributes {dimension_semantics = [#tpu.dimension_semantics<parallel>], iteration_bounds = array<i64: 2>, scalar_prefetch = 0 : i64, scratch_operands = 0 : i64, tpu.core_type = #tpu.core_type<tc>, window_params = [{transform_indices = @transform_0, window_bounds = array<i64: 3, 16, 48>}, {pipeline_mode = #tpu.pipeline_mode<synchronous>, transform_indices = @transform_1, window_bounds = array<i64: 3, 48, 128>}, {pipeline_mode = #tpu.pipeline_mode<synchronous>, transform_indices = @transform_2, window_bounds = array<i64: 3, 128>}, {pipeline_mode = #tpu.pipeline_mode<synchronous>, transform_indices = @transform_3, window_bounds = array<i64: 3, 128, 8>}, {pipeline_mode = #tpu.pipeline_mode<synchronous>, transform_indices = @transform_4, window_bounds = array<i64: 3, 8>}, {transform_indices = @transform_5, window_bounds = array<i64: 16, 8>}]} {
    %c0 = arith.constant 0 : index
    %c0_0 = arith.constant 0 : index
    %0 = vector.load %arg3[%c0, %c0_0] : memref<3x128xf32, #tpu.memory_space<vmem>>, vector<3x128xf32>
    %c0_1 = arith.constant 0 : index
    %c0_2 = arith.constant 0 : index
    %1 = vector.load %arg5[%c0_1, %c0_2] : memref<3x8xf32, #tpu.memory_space<vmem>>, vector<3x8xf32>
    %c0_3 = arith.constant 0 : index
    %c0_4 = arith.constant 0 : index
    %c0_5 = arith.constant 0 : index
    %2 = vector.load %arg1[%c0_3, %c0_4, %c0_5] : memref<3x16x48xbf16, #tpu.memory_space<vmem>>, vector<1x16x48xbf16>
    %3 = vector.shape_cast %2 : vector<1x16x48xbf16> to vector<16x48xbf16>
    %c0_6 = arith.constant 0 : index
    %c0_7 = arith.constant 0 : index
    %c0_8 = arith.constant 0 : index
    %4 = vector.load %arg2[%c0_6, %c0_7, %c0_8] : memref<3x48x128xbf16, #tpu.memory_space<vmem>>, vector<1x48x128xbf16>
    %5 = vector.shape_cast %4 : vector<1x48x128xbf16> to vector<48x128xbf16>
    %cst = arith.constant dense<0.000000e+00> : vector<16x128xf32>
    %6 = tpu.matmul %3, %5, %cst {dimension_numbers = #tpu.dot_dimension_numbers<[1], [0], [0], [1], [0, 0, 1, 1], [], []>} : vector<16x48xbf16>, vector<48x128xbf16>, vector<16x128xf32> -> vector<16x128xf32>
    %7 = vector.extract_strided_slice %0 {offsets = [0, 0], sizes = [1, 128], strides = [1, 1]} : vector<3x128xf32> to vector<1x128xf32>
    %8 = vector.broadcast %7 : vector<1x128xf32> to vector<16x128xf32>
    %9 = arith.addf %6, %8 : vector<16x128xf32>
    %cst_9 = arith.constant 0.000000e+00 : f32
    %10 = vector.broadcast %cst_9 : f32 to vector<16x128xf32>
    %11 = arith.maximumf %9, %10 : vector<16x128xf32>
    %12 = arith.truncf %11 : vector<16x128xf32> to vector<16x128xbf16>
    %c0_10 = arith.constant 0 : index
    %c0_11 = arith.constant 0 : index
    %c0_12 = arith.constant 0 : index
    %13 = vector.load %arg4[%c0_10, %c0_11, %c0_12] : memref<3x128x8xbf16, #tpu.memory_space<vmem>>, vector<1x128x8xbf16>
    %14 = vector.shape_cast %13 : vector<1x128x8xbf16> to vector<128x8xbf16>
    %cst_13 = arith.constant dense<0.000000e+00> : vector<16x8xf32>
    %15 = tpu.matmul %12, %14, %cst_13 {dimension_numbers = #tpu.dot_dimension_numbers<[1], [0], [0], [1], [0, 0, 1, 1], [], []>} : vector<16x128xbf16>, vector<128x8xbf16>, vector<16x8xf32> -> vector<16x8xf32>
    %16 = vector.extract_strided_slice %1 {offsets = [0, 0], sizes = [1, 8], strides = [1, 1]} : vector<3x8xf32> to vector<1x8xf32>
    %17 = vector.broadcast %16 : vector<1x8xf32> to vector<16x8xf32>
    %18 = arith.addf %15, %17 : vector<16x8xf32>
    %cst_14 = arith.constant dense<0xFF800000> : vector<16xf32>
    %19 = vector.multi_reduction <maximumf>, %18, %cst_14 [1] : vector<16x8xf32> to vector<16xf32>
    %20 = vector.shape_cast %19 : vector<16xf32> to vector<16x1xf32>
    %21 = vector.broadcast %20 : vector<16x1xf32> to vector<16x8xf32>
    %22 = arith.subf %18, %21 : vector<16x8xf32>
    %23 = math.exp %22 : vector<16x8xf32>
    %cst_15 = arith.constant dense<0.000000e+00> : vector<16xf32>
    %24 = vector.multi_reduction <add>, %23, %cst_15 [1] : vector<16x8xf32> to vector<16xf32>
    %25 = vector.shape_cast %24 : vector<16xf32> to vector<16x1xf32>
    %26 = tpu.reciprocal %25 {approx = true} : vector<16x1xf32> -> vector<16x1xf32>
    %27 = arith.mulf %25, %26 : vector<16x1xf32>
    %cst_16 = arith.constant 2.000000e+00 : f32
    %28 = vector.broadcast %cst_16 : f32 to vector<16x1xf32>
    %29 = arith.subf %28, %27 : vector<16x1xf32>
    %30 = arith.mulf %26, %29 : vector<16x1xf32>
    %31 = vector.broadcast %30 : vector<16x1xf32> to vector<16x8xf32>
    %32 = arith.mulf %23, %31 : vector<16x8xf32>
    %c1 = arith.constant 1 : index
    %c0_17 = arith.constant 0 : index
    %c0_18 = arith.constant 0 : index
    %33 = vector.load %arg1[%c1, %c0_17, %c0_18] : memref<3x16x48xbf16, #tpu.memory_space<vmem>>, vector<1x16x48xbf16>
    %34 = vector.shape_cast %33 : vector<1x16x48xbf16> to vector<16x48xbf16>
    %c1_19 = arith.constant 1 : index
    %c0_20 = arith.constant 0 : index
    %c0_21 = arith.constant 0 : index
    %35 = vector.load %arg2[%c1_19, %c0_20, %c0_21] : memref<3x48x128xbf16, #tpu.memory_space<vmem>>, vector<1x48x128xbf16>
    %36 = vector.shape_cast %35 : vector<1x48x128xbf16> to vector<48x128xbf16>
    %cst_22 = arith.constant dense<0.000000e+00> : vector<16x128xf32>
    %37 = tpu.matmul %34, %36, %cst_22 {dimension_numbers = #tpu.dot_dimension_numbers<[1], [0], [0], [1], [0, 0, 1, 1], [], []>} : vector<16x48xbf16>, vector<48x128xbf16>, vector<16x128xf32> -> vector<16x128xf32>
    %38 = vector.extract_strided_slice %0 {offsets = [1, 0], sizes = [1, 128], strides = [1, 1]} : vector<3x128xf32> to vector<1x128xf32>
    %39 = vector.broadcast %38 : vector<1x128xf32> to vector<16x128xf32>
    %40 = arith.addf %37, %39 : vector<16x128xf32>
    %cst_23 = arith.constant 0.000000e+00 : f32
    %41 = vector.broadcast %cst_23 : f32 to vector<16x128xf32>
    %42 = arith.maximumf %40, %41 : vector<16x128xf32>
    %43 = arith.truncf %42 : vector<16x128xf32> to vector<16x128xbf16>
    %c1_24 = arith.constant 1 : index
    %c0_25 = arith.constant 0 : index
    %c0_26 = arith.constant 0 : index
    %44 = vector.load %arg4[%c1_24, %c0_25, %c0_26] : memref<3x128x8xbf16, #tpu.memory_space<vmem>>, vector<1x128x8xbf16>
    %45 = vector.shape_cast %44 : vector<1x128x8xbf16> to vector<128x8xbf16>
    %cst_27 = arith.constant dense<0.000000e+00> : vector<16x8xf32>
    %46 = tpu.matmul %43, %45, %cst_27 {dimension_numbers = #tpu.dot_dimension_numbers<[1], [0], [0], [1], [0, 0, 1, 1], [], []>} : vector<16x128xbf16>, vector<128x8xbf16>, vector<16x8xf32> -> vector<16x8xf32>
    %47 = vector.extract_strided_slice %1 {offsets = [1, 0], sizes = [1, 8], strides = [1, 1]} : vector<3x8xf32> to vector<1x8xf32>
    %48 = vector.broadcast %47 : vector<1x8xf32> to vector<16x8xf32>
    %49 = arith.addf %46, %48 : vector<16x8xf32>
    %cst_28 = arith.constant dense<0xFF800000> : vector<16xf32>
    %50 = vector.multi_reduction <maximumf>, %49, %cst_28 [1] : vector<16x8xf32> to vector<16xf32>
    %51 = vector.shape_cast %50 : vector<16xf32> to vector<16x1xf32>
    %52 = vector.broadcast %51 : vector<16x1xf32> to vector<16x8xf32>
    %53 = arith.subf %49, %52 : vector<16x8xf32>
    %54 = math.exp %53 : vector<16x8xf32>
    %cst_29 = arith.constant dense<0.000000e+00> : vector<16xf32>
    %55 = vector.multi_reduction <add>, %54, %cst_29 [1] : vector<16x8xf32> to vector<16xf32>
    %56 = vector.shape_cast %55 : vector<16xf32> to vector<16x1xf32>
    %57 = tpu.reciprocal %56 {approx = true} : vector<16x1xf32> -> vector<16x1xf32>
    %58 = arith.mulf %56, %57 : vector<16x1xf32>
    %cst_30 = arith.constant 2.000000e+00 : f32
    %59 = vector.broadcast %cst_30 : f32 to vector<16x1xf32>
    %60 = arith.subf %59, %58 : vector<16x1xf32>
    %61 = arith.mulf %57, %60 : vector<16x1xf32>
    %62 = vector.broadcast %61 : vector<16x1xf32> to vector<16x8xf32>
    %63 = arith.mulf %54, %62 : vector<16x8xf32>
    %64 = arith.addf %32, %63 : vector<16x8xf32>
    %c2 = arith.constant 2 : index
    %c0_31 = arith.constant 0 : index
    %c0_32 = arith.constant 0 : index
    %65 = vector.load %arg1[%c2, %c0_31, %c0_32] : memref<3x16x48xbf16, #tpu.memory_space<vmem>>, vector<1x16x48xbf16>
    %66 = vector.shape_cast %65 : vector<1x16x48xbf16> to vector<16x48xbf16>
    %c2_33 = arith.constant 2 : index
    %c0_34 = arith.constant 0 : index
    %c0_35 = arith.constant 0 : index
    %67 = vector.load %arg2[%c2_33, %c0_34, %c0_35] : memref<3x48x128xbf16, #tpu.memory_space<vmem>>, vector<1x48x128xbf16>
    %68 = vector.shape_cast %67 : vector<1x48x128xbf16> to vector<48x128xbf16>
    %cst_36 = arith.constant dense<0.000000e+00> : vector<16x128xf32>
    %69 = tpu.matmul %66, %68, %cst_36 {dimension_numbers = #tpu.dot_dimension_numbers<[1], [0], [0], [1], [0, 0, 1, 1], [], []>} : vector<16x48xbf16>, vector<48x128xbf16>, vector<16x128xf32> -> vector<16x128xf32>
    %70 = vector.extract_strided_slice %0 {offsets = [2, 0], sizes = [1, 128], strides = [1, 1]} : vector<3x128xf32> to vector<1x128xf32>
    %71 = vector.broadcast %70 : vector<1x128xf32> to vector<16x128xf32>
    %72 = arith.addf %69, %71 : vector<16x128xf32>
    %cst_37 = arith.constant 0.000000e+00 : f32
    %73 = vector.broadcast %cst_37 : f32 to vector<16x128xf32>
    %74 = arith.maximumf %72, %73 : vector<16x128xf32>
    %75 = arith.truncf %74 : vector<16x128xf32> to vector<16x128xbf16>
    %c2_38 = arith.constant 2 : index
    %c0_39 = arith.constant 0 : index
    %c0_40 = arith.constant 0 : index
    %76 = vector.load %arg4[%c2_38, %c0_39, %c0_40] : memref<3x128x8xbf16, #tpu.memory_space<vmem>>, vector<1x128x8xbf16>
    %77 = vector.shape_cast %76 : vector<1x128x8xbf16> to vector<128x8xbf16>
    %cst_41 = arith.constant dense<0.000000e+00> : vector<16x8xf32>
    %78 = tpu.matmul %75, %77, %cst_41 {dimension_numbers = #tpu.dot_dimension_numbers<[1], [0], [0], [1], [0, 0, 1, 1], [], []>} : vector<16x128xbf16>, vector<128x8xbf16>, vector<16x8xf32> -> vector<16x8xf32>
    %79 = vector.extract_strided_slice %1 {offsets = [2, 0], sizes = [1, 8], strides = [1, 1]} : vector<3x8xf32> to vector<1x8xf32>
    %80 = vector.broadcast %79 : vector<1x8xf32> to vector<16x8xf32>
    %81 = arith.addf %78, %80 : vector<16x8xf32>
    %cst_42 = arith.constant dense<0xFF800000> : vector<16xf32>
    %82 = vector.multi_reduction <maximumf>, %81, %cst_42 [1] : vector<16x8xf32> to vector<16xf32>
    %83 = vector.shape_cast %82 : vector<16xf32> to vector<16x1xf32>
    %84 = vector.broadcast %83 : vector<16x1xf32> to vector<16x8xf32>
    %85 = arith.subf %81, %84 : vector<16x8xf32>
    %86 = math.exp %85 : vector<16x8xf32>
    %cst_43 = arith.constant dense<0.000000e+00> : vector<16xf32>
    %87 = vector.multi_reduction <add>, %86, %cst_43 [1] : vector<16x8xf32> to vector<16xf32>
    %88 = vector.shape_cast %87 : vector<16xf32> to vector<16x1xf32>
    %89 = tpu.reciprocal %88 {approx = true} : vector<16x1xf32> -> vector<16x1xf32>
    %90 = arith.mulf %88, %89 : vector<16x1xf32>
    %cst_44 = arith.constant 2.000000e+00 : f32
    %91 = vector.broadcast %cst_44 : f32 to vector<16x1xf32>
    %92 = arith.subf %91, %90 : vector<16x1xf32>
    %93 = arith.mulf %89, %92 : vector<16x1xf32>
    %94 = vector.broadcast %93 : vector<16x1xf32> to vector<16x8xf32>
    %95 = arith.mulf %86, %94 : vector<16x8xf32>
    %96 = arith.addf %64, %95 : vector<16x8xf32>
    %cst_45 = arith.constant 0.333333343 : f32
    %97 = vector.broadcast %cst_45 : f32 to vector<16x8xf32>
    %98 = arith.mulf %96, %97 : vector<16x8xf32>
    %99 = math.log %98 : vector<16x8xf32>
    %c0_46 = arith.constant 0 : index
    %c0_47 = arith.constant 0 : index
    %100 = vector.load %arg6[%c0_46, %c0_47] : memref<16x8xf32, #tpu.memory_space<vmem>>, vector<16x8xf32>
    tpu.vector_store %arg6[%c0_46, %c0_47], %99 {strides = array<i32>} : memref<16x8xf32, #tpu.memory_space<vmem>>, vector<16x8xf32>,
    return
  }
  func.func @transform_0(%arg0: i32) -> (i32, i32, i32) {
    %c0_i32 = arith.constant 0 : i32
    %c0_i32_0 = arith.constant 0 : i32
    %c0_i32_1 = arith.constant 0 : i32
    return %c0_i32, %arg0, %c0_i32_0 : i32, i32, i32
  }
  func.func @transform_1(%arg0: i32) -> (i32, i32, i32) {
    %c0_i32 = arith.constant 0 : i32
    %c0_i32_0 = arith.constant 0 : i32
    %c0_i32_1 = arith.constant 0 : i32
    %c0_i32_2 = arith.constant 0 : i32
    return %c0_i32, %c0_i32_0, %c0_i32_1 : i32, i32, i32
  }
  func.func @transform_2(%arg0: i32) -> (i32, i32) {
    %c0_i32 = arith.constant 0 : i32
    %c0_i32_0 = arith.constant 0 : i32
    %c0_i32_1 = arith.constant 0 : i32
    return %c0_i32, %c0_i32_0 : i32, i32
  }
  func.func @transform_3(%arg0: i32) -> (i32, i32, i32) {
    %c0_i32 = arith.constant 0 : i32
    %c0_i32_0 = arith.constant 0 : i32
    %c0_i32_1 = arith.constant 0 : i32
    %c0_i32_2 = arith.constant 0 : i32
    return %c0_i32, %c0_i32_0, %c0_i32_1 : i32, i32, i32
  }
  func.func @transform_4(%arg0: i32) -> (i32, i32) {
    %c0_i32 = arith.constant 0 : i32
    %c0_i32_0 = arith.constant 0 : i32
    %c0_i32_1 = arith.constant 0 : i32
    return %c0_i32, %c0_i32_0 : i32, i32
  }
  func.func @transform_5(%arg0: i32) -> (i32, i32) {
    %c0_i32 = arith.constant 0 : i32
    %c0_i32_0 = arith.constant 0 : i32
    return %arg0, %c0_i32 : i32, i32
  }
}

module attributes {stable_mosaic.version = 11 : i64} {
  func.func @_interp_kernel(%arg0: i32, %arg1: memref<3x16x48xbf16, #tpu.memory_space<vmem>>, %arg2: memref<3x48x128xbf16, #tpu.memory_space<vmem>>, %arg3: memref<3x128xf32, #tpu.memory_space<vmem>>, %arg4: memref<3x128x8xbf16, #tpu.memory_space<vmem>>, %arg5: memref<3x8xf32, #tpu.memory_space<vmem>>, %arg6: memref<16x8xf32, #tpu.memory_space<vmem>>) attributes {dimension_semantics = [#tpu.dimension_semantics<parallel>], iteration_bounds = array<i64: 2>, scalar_prefetch = 0 : i64, scratch_operands = 0 : i64, tpu.core_type = #tpu.core_type<tc>, window_params = [{transform_indices = @transform_0, window_bounds = array<i64: 3, 16, 48>}, {pipeline_mode = #tpu.pipeline_mode<synchronous>, transform_indices = @transform_1, window_bounds = array<i64: 3, 48, 128>}, {pipeline_mode = #tpu.pipeline_mode<synchronous>, transform_indices = @transform_2, window_bounds = array<i64: 3, 128>}, {pipeline_mode = #tpu.pipeline_mode<synchronous>, transform_indices = @transform_3, window_bounds = array<i64: 3, 128, 8>}, {pipeline_mode = #tpu.pipeline_mode<synchronous>, transform_indices = @transform_4, window_bounds = array<i64: 3, 8>}, {transform_indices = @transform_5, window_bounds = array<i64: 16, 8>}]} {
    %c0 = arith.constant 0 : index
    %c0_0 = arith.constant 0 : index
    %0 = vector.load %arg3[%c0, %c0_0] : memref<3x128xf32, #tpu.memory_space<vmem>>, vector<3x128xf32>
    %c0_1 = arith.constant 0 : index
    %c0_2 = arith.constant 0 : index
    %1 = vector.load %arg5[%c0_1, %c0_2] : memref<3x8xf32, #tpu.memory_space<vmem>>, vector<3x8xf32>
    %c0_3 = arith.constant 0 : index
    %c0_4 = arith.constant 0 : index
    %c0_5 = arith.constant 0 : index
    %2 = vector.load %arg1[%c0_3, %c0_4, %c0_5] : memref<3x16x48xbf16, #tpu.memory_space<vmem>>, vector<1x16x48xbf16>
    %3 = vector.shape_cast %2 : vector<1x16x48xbf16> to vector<16x48xbf16>
    %c0_6 = arith.constant 0 : index
    %c0_7 = arith.constant 0 : index
    %c0_8 = arith.constant 0 : index
    %4 = vector.load %arg2[%c0_6, %c0_7, %c0_8] : memref<3x48x128xbf16, #tpu.memory_space<vmem>>, vector<1x48x128xbf16>
    %5 = vector.shape_cast %4 : vector<1x48x128xbf16> to vector<48x128xbf16>
    %cst = arith.constant dense<0.000000e+00> : vector<16x128xf32>
    %6 = tpu.matmul %3, %5, %cst {dimension_numbers = #tpu.dot_dimension_numbers<[1], [0], [0], [1], [0, 0, 1, 1], [], []>} : vector<16x48xbf16>, vector<48x128xbf16>, vector<16x128xf32> -> vector<16x128xf32>
    %7 = vector.extract_strided_slice %0 {offsets = [0, 0], sizes = [1, 128], strides = [1, 1]} : vector<3x128xf32> to vector<1x128xf32>
    %8 = vector.broadcast %7 : vector<1x128xf32> to vector<16x128xf32>
    %9 = arith.addf %6, %8 : vector<16x128xf32>
    %cst_9 = arith.constant 0.000000e+00 : f32
    %10 = vector.broadcast %cst_9 : f32 to vector<16x128xf32>
    %11 = arith.maximumf %9, %10 : vector<16x128xf32>
    %12 = arith.truncf %11 : vector<16x128xf32> to vector<16x128xbf16>
    %c0_10 = arith.constant 0 : index
    %c0_11 = arith.constant 0 : index
    %c0_12 = arith.constant 0 : index
    %13 = vector.load %arg4[%c0_10, %c0_11, %c0_12] : memref<3x128x8xbf16, #tpu.memory_space<vmem>>, vector<1x128x8xbf16>
    %14 = vector.shape_cast %13 : vector<1x128x8xbf16> to vector<128x8xbf16>
    %cst_13 = arith.constant dense<0.000000e+00> : vector<16x8xf32>
    %15 = tpu.matmul %12, %14, %cst_13 {dimension_numbers = #tpu.dot_dimension_numbers<[1], [0], [0], [1], [0, 0, 1, 1], [], []>} : vector<16x128xbf16>, vector<128x8xbf16>, vector<16x8xf32> -> vector<16x8xf32>
    %16 = vector.extract_strided_slice %1 {offsets = [0, 0], sizes = [1, 8], strides = [1, 1]} : vector<3x8xf32> to vector<1x8xf32>
    %17 = vector.broadcast %16 : vector<1x8xf32> to vector<16x8xf32>
    %18 = arith.addf %15, %17 : vector<16x8xf32>
    %cst_14 = arith.constant dense<0xFF800000> : vector<16xf32>
    %19 = vector.multi_reduction <maximumf>, %18, %cst_14 [1] : vector<16x8xf32> to vector<16xf32>
    %20 = vector.shape_cast %19 : vector<16xf32> to vector<16x1xf32>
    %21 = vector.broadcast %20 : vector<16x1xf32> to vector<16x8xf32>
    %22 = arith.subf %18, %21 : vector<16x8xf32>
    %23 = math.exp %22 : vector<16x8xf32>
    %cst_15 = arith.constant dense<0.000000e+00> : vector<16xf32>
    %24 = vector.multi_reduction <add>, %23, %cst_15 [1] : vector<16x8xf32> to vector<16xf32>
    %25 = vector.shape_cast %24 : vector<16xf32> to vector<16x1xf32>
    %26 = tpu.reciprocal %25 {approx = true} : vector<16x1xf32> -> vector<16x1xf32>
    %27 = arith.mulf %25, %26 : vector<16x1xf32>
    %cst_16 = arith.constant 2.000000e+00 : f32
    %28 = vector.broadcast %cst_16 : f32 to vector<16x1xf32>
    %29 = arith.subf %28, %27 : vector<16x1xf32>
    %30 = arith.mulf %26, %29 : vector<16x1xf32>
    %31 = vector.broadcast %30 : vector<16x1xf32> to vector<16x8xf32>
    %32 = arith.mulf %23, %31 : vector<16x8xf32>
    %c1 = arith.constant 1 : index
    %c0_17 = arith.constant 0 : index
    %c0_18 = arith.constant 0 : index
    %33 = vector.load %arg1[%c1, %c0_17, %c0_18] : memref<3x16x48xbf16, #tpu.memory_space<vmem>>, vector<1x16x48xbf16>
    %34 = vector.shape_cast %33 : vector<1x16x48xbf16> to vector<16x48xbf16>
    %c1_19 = arith.constant 1 : index
    %c0_20 = arith.constant 0 : index
    %c0_21 = arith.constant 0 : index
    %35 = vector.load %arg2[%c1_19, %c0_20, %c0_21] : memref<3x48x128xbf16, #tpu.memory_space<vmem>>, vector<1x48x128xbf16>
    %36 = vector.shape_cast %35 : vector<1x48x128xbf16> to vector<48x128xbf16>
    %cst_22 = arith.constant dense<0.000000e+00> : vector<16x128xf32>
    %37 = tpu.matmul %34, %36, %cst_22 {dimension_numbers = #tpu.dot_dimension_numbers<[1], [0], [0], [1], [0, 0, 1, 1], [], []>} : vector<16x48xbf16>, vector<48x128xbf16>, vector<16x128xf32> -> vector<16x128xf32>
    %38 = vector.extract_strided_slice %0 {offsets = [1, 0], sizes = [1, 128], strides = [1, 1]} : vector<3x128xf32> to vector<1x128xf32>
    %39 = vector.broadcast %38 : vector<1x128xf32> to vector<16x128xf32>
    %40 = arith.addf %37, %39 : vector<16x128xf32>
    %cst_23 = arith.constant 0.000000e+00 : f32
    %41 = vector.broadcast %cst_23 : f32 to vector<16x128xf32>
    %42 = arith.maximumf %40, %41 : vector<16x128xf32>
    %43 = arith.truncf %42 : vector<16x128xf32> to vector<16x128xbf16>
    %c1_24 = arith.constant 1 : index
    %c0_25 = arith.constant 0 : index
    %c0_26 = arith.constant 0 : index
    %44 = vector.load %arg4[%c1_24, %c0_25, %c0_26] : memref<3x128x8xbf16, #tpu.memory_space<vmem>>, vector<1x128x8xbf16>
    %45 = vector.shape_cast %44 : vector<1x128x8xbf16> to vector<128x8xbf16>
    %cst_27 = arith.constant dense<0.000000e+00> : vector<16x8xf32>
    %46 = tpu.matmul %43, %45, %cst_27 {dimension_numbers = #tpu.dot_dimension_numbers<[1], [0], [0], [1], [0, 0, 1, 1], [], []>} : vector<16x128xbf16>, vector<128x8xbf16>, vector<16x8xf32> -> vector<16x8xf32>
    %47 = vector.extract_strided_slice %1 {offsets = [1, 0], sizes = [1, 8], strides = [1, 1]} : vector<3x8xf32> to vector<1x8xf32>
    %48 = vector.broadcast %47 : vector<1x8xf32> to vector<16x8xf32>
    %49 = arith.addf %46, %48 : vector<16x8xf32>
    %cst_28 = arith.constant dense<0xFF800000> : vector<16xf32>
    %50 = vector.multi_reduction <maximumf>, %49, %cst_28 [1] : vector<16x8xf32> to vector<16xf32>
    %51 = vector.shape_cast %50 : vector<16xf32> to vector<16x1xf32>
    %52 = vector.broadcast %51 : vector<16x1xf32> to vector<16x8xf32>
    %53 = arith.subf %49, %52 : vector<16x8xf32>
    %54 = math.exp %53 : vector<16x8xf32>
    %cst_29 = arith.constant dense<0.000000e+00> : vector<16xf32>
    %55 = vector.multi_reduction <add>, %54, %cst_29 [1] : vector<16x8xf32> to vector<16xf32>
    %56 = vector.shape_cast %55 : vector<16xf32> to vector<16x1xf32>
    %57 = tpu.reciprocal %56 {approx = true} : vector<16x1xf32> -> vector<16x1xf32>
    %58 = arith.mulf %56, %57 : vector<16x1xf32>
    %cst_30 = arith.constant 2.000000e+00 : f32
    %59 = vector.broadcast %cst_30 : f32 to vector<16x1xf32>
    %60 = arith.subf %59, %58 : vector<16x1xf32>
    %61 = arith.mulf %57, %60 : vector<16x1xf32>
    %62 = vector.broadcast %61 : vector<16x1xf32> to vector<16x8xf32>
    %63 = arith.mulf %54, %62 : vector<16x8xf32>
    %64 = arith.addf %32, %63 : vector<16x8xf32>
    %c2 = arith.constant 2 : index
    %c0_31 = arith.constant 0 : index
    %c0_32 = arith.constant 0 : index
    %65 = vector.load %arg1[%c2, %c0_31, %c0_32] : memref<3x16x48xbf16, #tpu.memory_space<vmem>>, vector<1x16x48xbf16>
    %66 = vector.shape_cast %65 : vector<1x16x48xbf16> to vector<16x48xbf16>
    %c2_33 = arith.constant 2 : index
    %c0_34 = arith.constant 0 : index
    %c0_35 = arith.constant 0 : index
    %67 = vector.load %arg2[%c2_33, %c0_34, %c0_35] : memref<3x48x128xbf16, #tpu.memory_space<vmem>>, vector<1x48x128xbf16>
    %68 = vector.shape_cast %67 : vector<1x48x128xbf16> to vector<48x128xbf16>
    %cst_36 = arith.constant dense<0.000000e+00> : vector<16x128xf32>
    %69 = tpu.matmul %66, %68, %cst_36 {dimension_numbers = #tpu.dot_dimension_numbers<[1], [0], [0], [1], [0, 0, 1, 1], [], []>} : vector<16x48xbf16>, vector<48x128xbf16>, vector<16x128xf32> -> vector<16x128xf32>
    %70 = vector.extract_strided_slice %0 {offsets = [2, 0], sizes = [1, 128], strides = [1, 1]} : vector<3x128xf32> to vector<1x128xf32>
    %71 = vector.broadcast %70 : vector<1x128xf32> to vector<16x128xf32>
    %72 = arith.addf %69, %71 : vector<16x128xf32>
    %cst_37 = arith.constant 0.000000e+00 : f32
    %73 = vector.broadcast %cst_37 : f32 to vector<16x128xf32>
    %74 = arith.maximumf %72, %73 : vector<16x128xf32>
    %75 = arith.truncf %74 : vector<16x128xf32> to vector<16x128xbf16>
    %c2_38 = arith.constant 2 : index
    %c0_39 = arith.constant 0 : index
    %c0_40 = arith.constant 0 : index
    %76 = vector.load %arg4[%c2_38, %c0_39, %c0_40] : memref<3x128x8xbf16, #tpu.memory_space<vmem>>, vector<1x128x8xbf16>
    %77 = vector.shape_cast %76 : vector<1x128x8xbf16> to vector<128x8xbf16>
    %cst_41 = arith.constant dense<0.000000e+00> : vector<16x8xf32>
    %78 = tpu.matmul %75, %77, %cst_41 {dimension_numbers = #tpu.dot_dimension_numbers<[1], [0], [0], [1], [0, 0, 1, 1], [], []>} : vector<16x128xbf16>, vector<128x8xbf16>, vector<16x8xf32> -> vector<16x8xf32>
    %79 = vector.extract_strided_slice %1 {offsets = [2, 0], sizes = [1, 8], strides = [1, 1]} : vector<3x8xf32> to vector<1x8xf32>
    %80 = vector.broadcast %79 : vector<1x8xf32> to vector<16x8xf32>
    %81 = arith.addf %78, %80 : vector<16x8xf32>
    %cst_42 = arith.constant dense<0xFF800000> : vector<16xf32>
    %82 = vector.multi_reduction <maximumf>, %81, %cst_42 [1] : vector<16x8xf32> to vector<16xf32>
    %83 = vector.shape_cast %82 : vector<16xf32> to vector<16x1xf32>
    %84 = vector.broadcast %83 : vector<16x1xf32> to vector<16x8xf32>
    %85 = arith.subf %81, %84 : vector<16x8xf32>
    %86 = math.exp %85 : vector<16x8xf32>
    %cst_43 = arith.constant dense<0.000000e+00> : vector<16xf32>
    %87 = vector.multi_reduction <add>, %86, %cst_43 [1] : vector<16x8xf32> to vector<16xf32>
    %88 = vector.shape_cast %87 : vector<16xf32> to vector<16x1xf32>
    %89 = tpu.reciprocal %88 {approx = true} : vector<16x1xf32> -> vector<16x1xf32>
    %90 = arith.mulf %88, %89 : vector<16x1xf32>
    %cst_44 = arith.constant 2.000000e+00 : f32
    %91 = vector.broadcast %cst_44 : f32 to vector<16x1xf32>
    %92 = arith.subf %91, %90 : vector<16x1xf32>
    %93 = arith.mulf %89, %92 : vector<16x1xf32>
    %94 = vector.broadcast %93 : vector<16x1xf32> to vector<16x8xf32>
    %95 = arith.mulf %86, %94 : vector<16x8xf32>
    %96 = arith.addf %64, %95 : vector<16x8xf32>
    %cst_45 = arith.constant 0.333333343 : f32
    %97 = vector.broadcast %cst_45 : f32 to vector<16x8xf32>
    %98 = arith.mulf %96, %97 : vector<16x8xf32>
    %99 = math.log %98 : vector<16x8xf32>
    %c0_46 = arith.constant 0 : index
    %c0_47 = arith.constant 0 : index
    %100 = vector.load %arg6[%c0_46, %c0_47] : memref<16x8xf32, #tpu.memory_space<vmem>>, vector<16x8xf32>
    tpu.vector_store %arg6[%c0_46, %c0_47], %99 {strides = array<i32>} : memref<16x8xf32, #tpu.memory_space<vmem>>, vector<16x8xf32>,
    return
  }
  func.func @transform_0(%arg0: i32) -> (i32, i32, i32) {
    %c0_i32 = arith.constant 0 : i32
    %c0_i32_0 = arith.constant 0 : i32
    %c0_i32_1 = arith.constant 0 : i32
    return %c0_i32, %arg0, %c0_i32_0 : i32, i32, i32
  }
  func.func @transform_1(%arg0: i32) -> (i32, i32, i32) {
    %c0_i32 = arith.constant 0 : i32
    %c0_i32_0 = arith.constant 0 : i32
    %c0_i32_1 = arith.constant 0 : i32
    %c0_i32_2 = arith.constant 0 : i32
    return %c0_i32, %c0_i32_0, %c0_i32_1 : i32, i32, i32
  }
  func.func @transform_2(%arg0: i32) -> (i32, i32) {
    %c0_i32 = arith.constant 0 : i32
    %c0_i32_0 = arith.constant 0 : i32
    %c0_i32_1 = arith.constant 0 : i32
    return %c0_i32, %c0_i32_0 : i32, i32
  }
  func.func @transform_3(%arg0: i32) -> (i32, i32, i32) {
    %c0_i32 = arith.constant 0 : i32
    %c0_i32_0 = arith.constant 0 : i32
    %c0_i32_1 = arith.constant 0 : i32
    %c0_i32_2 = arith.constant 0 : i32
    return %c0_i32, %c0_i32_0, %c0_i32_1 : i32, i32, i32
  }
  func.func @transform_4(%arg0: i32) -> (i32, i32) {
    %c0_i32 = arith.constant 0 : i32
    %c0_i32_0 = arith.constant 0 : i32
    %c0_i32_1 = arith.constant 0 : i32
    return %c0_i32, %c0_i32_0 : i32, i32
  }
  func.func @transform_5(%arg0: i32) -> (i32, i32) {
    %c0_i32 = arith.constant 0 : i32
    %c0_i32_0 = arith.constant 0 : i32
    return %arg0, %c0_i32 : i32, i32
  }
}

</mosaic_0001>

<llo_original>
// kernel: tpu_custom_call.1
$region0: #{tpu_custom_call.1}
  #allocation0 [shape = 'u32[]', space=smem, size = 0x4, offset = 0x4, fixed_abs, tag = 'smem constant byte address 0x4 - core index']
  #allocation1 [shape = 'u32[144,128]{1,0:T(1,128)}', space=vmem, size = 0x12000, scoped, tag = 'internal scratch']
  %s0 = inlined_call_operand.vmem [shape: bf16[3,32,48], index: 0, kind: input, shape index: {}]
  %s1 = inlined_call_operand.vmem [shape: bf16[3,48,128], index: 1, kind: input, shape index: {}]
  %s2 = inlined_call_operand.vmem [shape: f32[3,128], index: 2, kind: input, shape index: {}]
  %s3 = inlined_call_operand.vmem [shape: bf16[3,128,8], index: 3, kind: input, shape index: {}]
  %s4 = inlined_call_operand.vmem [shape: f32[3,8], index: 4, kind: input, shape index: {}]
  %s5 = inlined_call_operand.vmem [shape: f32[32,8], index: 5, kind: output, shape index: {}]
  %s6 = sld [smem:[#allocation0]]
  $region94: #{tpu_custom_call.1} parent=0
    _
  %s8 = ssub.s32 1, %s6
  %s9 = scalar_select 0, %s8, %s6
  $region1: #{tpu_custom_call.1} parent=0
    #allocation2 [shape = 'u8[24576]{0}', space=vmem, size = 0x6000, scoped, tag = 'input window, operand 0']
    loop: start=0, step=1, limit=4
    $region2: #{tpu_custom_call.1} parent=1 // loop_pre_header
      _
    $region3: #{tpu_custom_call.1} parent=1 // loop_header
      %s11 = sphi 0, %s15
      %p12 = scmp.ge.s32.totalorder %s11, 4
      %s21 = sphi 0, %s23
      %s24 = sphi 0, %s21
      %s25 = sphi 0, %s24
      %s41 = sphi 0, %s25
      %s45 = sphi 0, %s45
      %s47 = sphi 0, %s45
      %s48 = sphi 0, %s47
      %s62 = sphi 0, %s48
      %s66 = sphi 0, %s66
      %s68 = sphi 0, %s66
      %s69 = sphi 0, %s68
      %s83 = sphi 0, %s69
      %s87 = sphi 0, %s87
      %s89 = sphi 0, %s87
      %s90 = sphi 0, %s89
      %s104 = sphi 0, %s90
      %s108 = sphi 0, %s108
      %s110 = sphi 0, %s108
      %s111 = sphi 0, %s110
      %s125 = sphi 0, %s111
      %s131 = sphi 0, %s133
      %s134 = sphi 0, %s131
      %s135 = sphi 0, %s134
      %s151 = sphi 0, %s135
    $region4: #{tpu_custom_call.1} parent=1 // loop_header_branch
      %14 = sbr.rel (%p12) target = $region8
    $region5: #{tpu_custom_call.1} parent=1 // loop_body
      %s16 = ssub.s32 %s11, 1
      %s17 = ssub.s32 %s11, 2
      %s18 = sadd.s32 %s11, 1
      %s19 = ssub.s32 %s11, %s18
      %p20 = scmp.eq.s32.totalorder %s19, 0
      %s22 = sadd.s32 %s21, 1
      %s23 = scalar_select %p20, %s21, %s22
      %p26 = pneg %p20
      %p27 = scmp.eq.s32.totalorder %s11, 1
      %p28 = por %p26, %p27
      %p29 = scmp.ne.s32.totalorder %s21, %s24
      %p30 = scmp.eq.s32.totalorder %s11, 0
      %p31 = por %p29, %p30
      %p32 = scmp.ne.s32.totalorder %s21, %s24
      %p33 = scmp.eq.s32.totalorder %s16, 1
      %p34 = por %p32, %p33
      %p35 = scmp.ne.s32.totalorder %s24, %s25
      %p36 = scmp.eq.s32.totalorder %s16, 0
      %p37 = por %p35, %p36
      %p38 = scmp.ne.s32.totalorder %s24, %s25
      %p39 = scmp.eq.s32.totalorder %s17, 1
      %p40 = por %p38, %p39
      %p42 = scmp.ne.s32.totalorder %s25, %s41
      %p43 = scmp.eq.s32.totalorder %s17, 0
      %p44 = por %p42, %p43
      %s46 = sadd.s32 %s45, 1
      %p49 = scmp.eq.s32.totalorder %s11, 1
      %p50 = scmp.ne.s32.totalorder %s45, %s47
      %p51 = scmp.eq.s32.totalorder %s11, 0
      %p52 = por %p50, %p51
      %p53 = scmp.ne.s32.totalorder %s45, %s47
      %p54 = scmp.eq.s32.totalorder %s16, 1
      %p55 = por %p53, %p54
      %p56 = scmp.ne.s32.totalorder %s47, %s48
      %p57 = scmp.eq.s32.totalorder %s16, 0
      %p58 = por %p56, %p57
      %p59 = scmp.ne.s32.totalorder %s47, %s48
      %p60 = scmp.eq.s32.totalorder %s17, 1
      %p61 = por %p59, %p60
      %p63 = scmp.ne.s32.totalorder %s48, %s62
      %p64 = scmp.eq.s32.totalorder %s17, 0
      %p65 = por %p63, %p64
      %s67 = sadd.s32 %s66, 1
      %p70 = scmp.eq.s32.totalorder %s11, 1
      %p71 = scmp.ne.s32.totalorder %s66, %s68
      %p72 = scmp.eq.s32.totalorder %s11, 0
      %p73 = por %p71, %p72
      %p74 = scmp.ne.s32.totalorder %s66, %s68
      %p75 = scmp.eq.s32.totalorder %s16, 1
      %p76 = por %p74, %p75
      %p77 = scmp.ne.s32.totalorder %s68, %s69
      %p78 = scmp.eq.s32.totalorder %s16, 0
      %p79 = por %p77, %p78
      %p80 = scmp.ne.s32.totalorder %s68, %s69
      %p81 = scmp.eq.s32.totalorder %s17, 1
      %p82 = por %p80, %p81
      %p84 = scmp.ne.s32.totalorder %s69, %s83
      %p85 = scmp.eq.s32.totalorder %s17, 0
      %p86 = por %p84, %p85
      %s88 = sadd.s32 %s87, 1
      %p91 = scmp.eq.s32.totalorder %s11, 1
      %p92 = scmp.ne.s32.totalorder %s87, %s89
      %p93 = scmp.eq.s32.totalorder %s11, 0
      %p94 = por %p92, %p93
      %p95 = scmp.ne.s32.totalorder %s87, %s89
      %p96 = scmp.eq.s32.totalorder %s16, 1
      %p97 = por %p95, %p96
      %p98 = scmp.ne.s32.totalorder %s89, %s90
      %p99 = scmp.eq.s32.totalorder %s16, 0
      %p100 = por %p98, %p99
      %p101 = scmp.ne.s32.totalorder %s89, %s90
      %p102 = scmp.eq.s32.totalorder %s17, 1
      %p103 = por %p101, %p102
      %p105 = scmp.ne.s32.totalorder %s90, %s104
      %p106 = scmp.eq.s32.totalorder %s17, 0
      %p107 = por %p105, %p106
      %s109 = sadd.s32 %s108, 1
      %p112 = scmp.eq.s32.totalorder %s11, 1
      %p113 = scmp.ne.s32.totalorder %s108, %s110
      %p114 = scmp.eq.s32.totalorder %s11, 0
      %p115 = por %p113, %p114
      %p116 = scmp.ne.s32.totalorder %s108, %s110
      %p117 = scmp.eq.s32.totalorder %s16, 1
      %p118 = por %p116, %p117
      %p119 = scmp.ne.s32.totalorder %s110, %s111
      %p120 = scmp.eq.s32.totalorder %s16, 0
      %p121 = por %p119, %p120
      %p122 = scmp.ne.s32.totalorder %s110, %s111
      %p123 = scmp.eq.s32.totalorder %s17, 1
      %p124 = por %p122, %p123
      %p126 = scmp.ne.s32.totalorder %s111, %s125
      %p127 = scmp.eq.s32.totalorder %s17, 0
      %p128 = por %p126, %p127
      %s129 = ssub.s32 %s11, %s18
      %p130 = scmp.eq.s32.totalorder %s129, 0
      %s132 = sadd.s32 %s131, 1
      %s133 = scalar_select %p130, %s131, %s132
      %p136 = pneg %p130
      %p137 = scmp.eq.s32.totalorder %s11, 1
      %p138 = por %p136, %p137
      %p139 = scmp.ne.s32.totalorder %s131, %s134
      %p140 = scmp.eq.s32.totalorder %s11, 0
      %p141 = por %p139, %p140
      %p142 = scmp.ne.s32.totalorder %s131, %s134
      %p143 = scmp.eq.s32.totalorder %s16, 1
      %p144 = por %p142, %p143
      %p145 = scmp.ne.s32.totalorder %s134, %s135
      %p146 = scmp.eq.s32.totalorder %s16, 0
      %p147 = por %p145, %p146
      %p148 = scmp.ne.s32.totalorder %s134, %s135
      %p149 = scmp.eq.s32.totalorder %s17, 1
      %p150 = por %p148, %p149
      %p152 = scmp.ne.s32.totalorder %s135, %s151
      %p153 = scmp.eq.s32.totalorder %s17, 0
      %p154 = por %p152, %p153
      %p155 = scmp.le.s32.totalorder 1, %s11
      %p156 = scmp.lt.s32.totalorder %s11, 3
      %p157 = pnand %p155, %p156
      %p158 = pneg %p157
      // Predicated region
      $region9: #{tpu_custom_call.1} parent=5 // pred_check
        _
      $region10: #{tpu_custom_call.1} parent=5 // pred_check_branch
        %160 = sbr.rel (%p157) target = $region12
      $region11: #{tpu_custom_call.1} parent=5 // pred_region
        %s161 = ssub.s32 %s11, 1
        // Predicated region
        $region13: #{tpu_custom_call.1} parent=11 // pred_check
          %p162 = pneg %p58
        $region14: #{tpu_custom_call.1} parent=11 // pred_check_branch
          %164 = sbr.rel (%p162) target = $region16
        $region15: #{tpu_custom_call.1} parent=11 // pred_region
          _
        $region16: #{tpu_custom_call.1} parent=11 // pred_fallthru
          _
        // Predicated region
        $region17: #{tpu_custom_call.1} parent=11 // pred_check
          %p165 = pneg %p79
        $region18: #{tpu_custom_call.1} parent=11 // pred_check_branch
          %167 = sbr.rel (%p165) target = $region20
        $region19: #{tpu_custom_call.1} parent=11 // pred_region
          _
        $region20: #{tpu_custom_call.1} parent=11 // pred_fallthru
          _
        // Predicated region
        $region21: #{tpu_custom_call.1} parent=11 // pred_check
          %p168 = pneg %p100
        $region22: #{tpu_custom_call.1} parent=11 // pred_check_branch
          %170 = sbr.rel (%p168) target = $region24
        $region23: #{tpu_custom_call.1} parent=11 // pred_region
          _
        $region24: #{tpu_custom_call.1} parent=11 // pred_fallthru
          _
        // Predicated region
        $region25: #{tpu_custom_call.1} parent=11 // pred_check
          %p171 = pneg %p121
        $region26: #{tpu_custom_call.1} parent=11 // pred_check_branch
          %173 = sbr.rel (%p171) target = $region28
        $region27: #{tpu_custom_call.1} parent=11 // pred_region
          _
        $region28: #{tpu_custom_call.1} parent=11 // pred_fallthru
          _
      $region12: #{tpu_custom_call.1} parent=5 // pred_fallthru
        _
      %p174 = scmp.lt.s32.totalorder %s11, 2
      // Predicated region
      $region29: #{tpu_custom_call.1} parent=5 // pred_check
        %p175 = pneg %p174
      $region30: #{tpu_custom_call.1} parent=5 // pred_check_branch
        %177 = sbr.rel (%p175) target = $region32
      $region31: #{tpu_custom_call.1} parent=5 // pred_region
        // Predicated region
        $region33: #{tpu_custom_call.1} parent=31 // pred_check
          %p178 = pneg %p31
        $region34: #{tpu_custom_call.1} parent=31 // pred_check_branch
          %180 = sbr.rel (%p178) target = $region36
        $region35: #{tpu_custom_call.1} parent=31 // pred_region
          %s181 = sand.u32 %s21, 1
          %s182 = sand.u32 %s21, 1
          %s183 = smul.addr %s182, 24
          %s184 = scalar_lea.vmem [#allocation2], %s183
          %s185 = smul.u32 2, %s11
          %s186 = smul.addr %s185, 4
          %s187 = scalar_lea.vmem %s0, %s186
          // Predicated region
          $region37: #{tpu_custom_call.1} parent=35 // pred_check
            _
          $region38: #{tpu_custom_call.1} parent=35 // pred_check_branch
            %189 = sbr.rel (0) target = $region40
          $region39: #{tpu_custom_call.1} parent=35 // pred_region
            // Predicated region
            $region41: #{tpu_custom_call.1} parent=39 // pred_check
              _
            $region42: #{tpu_custom_call.1} parent=39 // pred_check_branch
              %191 = sbr.rel target = $region44
            $region43: #{tpu_custom_call.1} parent=39 // pred_region
              // Predicated region
              $region56: #{tpu_custom_call.1} parent=43 // pred_check
                _
              $region57: #{tpu_custom_call.1} parent=43 // pred_check_branch
                %216 = sbr.rel (0) target = $region59
              $region58: #{tpu_custom_call.1} parent=43 // pred_region
                loop: start=0, step=1, limit=1
                $region60: #{tpu_custom_call.1} parent=58 // loop_pre_header
                  _
                $region61: #{tpu_custom_call.1} parent=58 // loop_header
                  %s218 = sphi 0, %s222
                  %p219 = scmp.ge.s32.totalorder %s218, 1
                  %s223 = sphi %s187, %s187
                  %s224 = sphi %s184, %s184
                $region62: #{tpu_custom_call.1} parent=58 // loop_header_branch
                  %221 = sbr.rel (%p219) target = $region66
                $region63: #{tpu_custom_call.1} parent=58 // loop_body
                  _
                $region64: #{tpu_custom_call.1} parent=58 // loop_footer
                  %s222 = sadd.s32 1, %s218
                $region65: #{tpu_custom_call.1} parent=58 // loop_footer_branch
                  %217 = sbr.rel target = $region61
                $region66: #{tpu_custom_call.1} parent=58 // loop_exit
                  _
                loop: start=0, step=1, limit=1
                $region67: #{tpu_custom_call.1} parent=58 // loop_pre_header
                  _
                $region68: #{tpu_custom_call.1} parent=58 // loop_header
                  %s227 = sphi 0, %s231
                  %p228 = scmp.ge.s32.totalorder %s227, 1
                  %s232 = sphi %s187, %s187
                  %s233 = sphi %s184, %s184
                $region69: #{tpu_custom_call.1} parent=58 // loop_header_branch
                  %230 = sbr.rel (%p228) target = $region73
                $region70: #{tpu_custom_call.1} parent=58 // loop_body
                  %v234 = vld [vmem:[%s232] sm:$0xf]
                  %235 = vst [vmem:[%s233] sm:$0xf] %v234
                  %v236 = vld [vmem:[%s232 + $0x4] sm:$0xf]
                  %237 = vst [vmem:[%s233 + $0x4] sm:$0xf] %v236
                  %v238 = vld [vmem:[%s232 + $0x10] sm:$0xf]
                  %239 = vst [vmem:[%s233 + $0x8] sm:$0xf] %v238
                  %v240 = vld [vmem:[%s232 + $0x14] sm:$0xf]
                  %241 = vst [vmem:[%s233 + $0xc] sm:$0xf] %v240
                  %v242 = vld [vmem:[%s232 + $0x20] sm:$0xf]
                  %243 = vst [vmem:[%s233 + $0x10] sm:$0xf] %v242
                  %v244 = vld [vmem:[%s232 + $0x24] sm:$0xf]
                  %245 = vst [vmem:[%s233 + $0x14] sm:$0xf] %v244
                $region71: #{tpu_custom_call.1} parent=58 // loop_footer
                  %s231 = sadd.s32 1, %s227
                $region72: #{tpu_custom_call.1} parent=58 // loop_footer_branch
                  %226 = sbr.rel target = $region68
                $region73: #{tpu_custom_call.1} parent=58 // loop_exit
                  _
              $region59: #{tpu_custom_call.1} parent=43 // pred_fallthru
                _
            $region44: #{tpu_custom_call.1} parent=39 // pred_fallthru
              _
            // Predicated region
            $region45: #{tpu_custom_call.1} parent=39 // pred_check
              _
            $region46: #{tpu_custom_call.1} parent=39 // pred_check_branch
              %193 = sbr.rel (0) target = $region48
            $region47: #{tpu_custom_call.1} parent=39 // pred_region
              loop: start=0, step=1, limit=1
              $region49: #{tpu_custom_call.1} parent=47 // loop_pre_header
                _
              $region50: #{tpu_custom_call.1} parent=47 // loop_header
                %s196 = sphi 0, %s200
                %p197 = scmp.ge.s32.totalorder %s196, 1
                %s201 = sphi %s187, %s187
                %s202 = sphi %s184, %s184
              $region51: #{tpu_custom_call.1} parent=47 // loop_header_branch
                %199 = sbr.rel (%p197) target = $region55
              $region52: #{tpu_custom_call.1} parent=47 // loop_body
                %v203 = vld [vmem:[%s201] sm:$0xf]
                %204 = vst [vmem:[%s202] sm:$0xf] %v203
                %v205 = vld [vmem:[%s201 + $0x4] sm:$0xf]
                %206 = vst [vmem:[%s202 + $0x4] sm:$0xf] %v205
                %v207 = vld [vmem:[%s201 + $0x10] sm:$0xf]
                %208 = vst [vmem:[%s202 + $0x8] sm:$0xf] %v207
                %v209 = vld [vmem:[%s201 + $0x14] sm:$0xf]
                %210 = vst [vmem:[%s202 + $0xc] sm:$0xf] %v209
                %v211 = vld [vmem:[%s201 + $0x20] sm:$0xf]
                %212 = vst [vmem:[%s202 + $0x10] sm:$0xf] %v211
                %v213 = vld [vmem:[%s201 + $0x24] sm:$0xf]
                %214 = vst [vmem:[%s202 + $0x14] sm:$0xf] %v213
              $region53: #{tpu_custom_call.1} parent=47 // loop_footer
                %s200 = sadd.s32 1, %s196
              $region54: #{tpu_custom_call.1} parent=47 // loop_footer_branch
                %195 = sbr.rel target = $region50
              $region55: #{tpu_custom_call.1} parent=47 // loop_exit
                _
            $region48: #{tpu_custom_call.1} parent=39 // pred_fallthru
              _
          $region40: #{tpu_custom_call.1} parent=35 // pred_fallthru
            _
          %246 = vnop
        $region36: #{tpu_custom_call.1} parent=31 // pred_fallthru
          _
      $region32: #{tpu_custom_call.1} parent=5 // pred_fallthru
        _
      %p247 = scmp.le.s32.totalorder 1, %s11
      %p248 = scmp.lt.s32.totalorder %s11, 3
      %p249 = pnand %p247, %p248
      %p250 = pneg %p249
      // Predicated region
      $region74: #{tpu_custom_call.1} parent=5 // pred_check
        _
      $region75: #{tpu_custom_call.1} parent=5 // pred_check_branch
        %252 = sbr.rel (%p249) target = $region77
      $region76: #{tpu_custom_call.1} parent=5 // pred_region
        %s253 = ssub.s32 %s11, 1
        %s254 = sand.u32 %s24, 1
        %s255 = sand.u32 %s24, 1
        %s256 = smul.addr %s255, 24
        %s257 = scalar_lea.vmem [#allocation2], %s256
        // Predicated region
        $region78: #{tpu_custom_call.1} parent=76 // pred_check
          %p258 = pneg %p37
        $region79: #{tpu_custom_call.1} parent=76 // pred_check_branch
          %260 = sbr.rel (%p258) target = $region81
        $region80: #{tpu_custom_call.1} parent=76 // pred_region
          _
        $region81: #{tpu_custom_call.1} parent=76 // pred_fallthru
          _
        %s261 = sand.u32 %s24, 1
        %s262 = sand.u32 %s24, 1
        %s263 = smul.addr %s262, 24
        %s264 = scalar_lea.vmem [#allocation2], %s263
        %p265 = pneg %p37
        %p266 = pneg %p34
        %p267 = pneg %p58
        %p268 = pneg %p55
        %p269 = pneg %p79
        %p270 = pneg %p76
        %p271 = pneg %p100
        %p272 = pneg %p97
        %p273 = pneg %p121
        %p274 = pneg %p118
        %p275 = pneg %p147
        %p276 = pneg %p144
        %s277 = smul.u32 2, %s16
        %p278 = scmp.lt.s32.totalorder %s277, 3
        %s279 = scalar_select %p278, %s277, 3
        %s280 = smul.addr %s279, 8
        %s281 = scalar_lea.vmem %s5, %s280
        %s282 = smul.u32 2, %s16
        %s283 = smul.u32 2, %s16
        %p284 = scmp.lt.s32.totalorder %s283, 3
        %s285 = scalar_select %p284, %s283, 3
        %s286 = smul.addr %s285, 8
        %s287 = scalar_lea.vmem %s5, %s286
        %s288 = smul.u32 2, %s16
        %v290 = vld [vmem:[%s2] sm:$0x7]
        %v291 = vld [vmem:[%s4] sm:$0x7]
        %v292 = vld [vmem:[%s257] sm:$0xf]
        %v293 = vld [vmem:[%s257 + $0x4] sm:$0xf]
        %v294 = vld [vmem:[%s1] sm:$0xf]
        %v295 = vld [vmem:[%s1 + $0x4] sm:$0xf]
        %v296 = vld [vmem:[%s1 + $0x8] sm:$0xf]
        %v297 = vld [vmem:[%s1 + $0xc] sm:$0xf]
        %v298 = vld [vmem:[%s1 + $0x10] sm:$0xf]
        %v299 = vld [vmem:[%s1 + $0x14] sm:$0xf]
        %v300 = vlaneseq
        %v301 = vshrl.u32 %v300, 7
        %v302 = vsub.s32 0, %v301
        %v303 = vrot.slane %v290, %v302
        %v306 = vunpack.c.l.b16 %v292
        %v307 = vunpack.c.l.b16 %v293
        %v308 = vpack.c.b16 %v307, %v306
        %v315 = vunpack.c.l.b16 %v294
        %v316 = vunpack.c.l.b16 %v295
        %v317 = vunpack.c.l.b16 %v296
        %v318 = vunpack.c.l.b16 %v297
        %v319 = vunpack.c.l.b16 %v298
        %v320 = vunpack.c.l.b16 %v299
        %v321 = vpack.c.b16 %v316, %v315
        %v322 = vpack.c.b16 %v318, %v317
        %v323 = vpack.c.b16 %v320, %v319
        %vm327 = vcmask 392192
        %v329 = vsel %vm327, %v308, 0
        %331 = vmatprep.subr.bf16.mxu0 0
        %332 = vmatpush1.bf16.msra.mxu0 %v321
        %333 = vmatprep.subr.bf16.mxu0 0
        %334 = vmatpush1.bf16.msra.mxu0 %v322
        %335 = vmatprep.subr.bf16.mxu0 0
        %336 = vmatpush1.bf16.msra.mxu0 %v323
        %337 = vmatprep.subr.bf16.mxu0 0
        %338 = vmatpush1.bf16.msra.mxu0 0
        %339 = vmatprep.subr.bf16.mxu0 0
        %340 = vmatpush1.bf16.msra.mxu0 0
        %341 = vmatprep.subr.bf16.mxu0 0
        %342 = vmatpush1.bf16.msra.mxu0 0
        %343 = vmatprep.subr.bf16.mxu0 0
        %344 = vmatpush1.bf16.msra.mxu0 0
        %345 = vmatprep.subr.bf16.mxu0 0
        %346 = vmatpush1.bf16.msra.mxu0 0
        %347 = vmatprep.subr.bf16.mxu0 0
        %348 = vmatpush1.bf16.msra.mxu0 0
        %349 = vmatprep.subr.bf16.mxu0 0
        %350 = vmatpush1.bf16.msra.mxu0 0
        %351 = vmatprep.subr.bf16.mxu0 0
        %352 = vmatpush1.bf16.msra.mxu0 0
        %353 = vmatprep.subr.bf16.mxu0 0
        %354 = vmatpush1.bf16.msra.mxu0 0
        %355 = vmatprep.subr.bf16.mxu0 0
        %356 = vmatpush1.bf16.msra.mxu0 0
        %357 = vmatprep.subr.bf16.mxu0 0
        %358 = vmatpush1.bf16.msra.mxu0 0
        %359 = vmatprep.subr.bf16.mxu0 0
        %360 = vmatpush1.bf16.msra.mxu0 0
        %361 = vmatprep.subr.bf16.mxu0 0
        %362 = vmatpush1.bf16.msra.mxu0 0
        %363 = vmatprep.mubr.bf16.mxu0 0
        %364 = vmatmul.mubr.bf16.gmra.mrb[0].mxu0 %v329
        %v365 = vpop.f32.mrb[0].mxu0
        %v366 = vadd.f32 %v303, %v365
        %v367 = vpop.f32.mrb[0].mxu0
        %v368 = vpop.f32.mrb[0].mxu0
        %v369 = vadd.f32 %v303, %v368
        %v370 = vpop.f32.mrb[0].mxu0
        %371 = vdwg.mxu0
        %v372 = vmax.f32 %v366, 0.0
        %v373 = vmax.f32 %v369, 0.0
        %v374 = vpack.c.bf16 %v373, %v372
        %v375 = vld [vmem:[%s3] sm:$0xf]
        %v376 = vld [vmem:[%s3 + $0x4] sm:$0xf]
        %v377 = vld [vmem:[%s3 + $0x8] sm:$0xf]
        %v378 = vld [vmem:[%s3 + $0xc] sm:$0xf]
        %v379 = vld [vmem:[%s3 + $0x10] sm:$0xf]
        %v380 = vld [vmem:[%s3 + $0x14] sm:$0xf]
        %v381 = vld [vmem:[%s3 + $0x18] sm:$0xf]
        %v382 = vld [vmem:[%s3 + $0x1c] sm:$0xf]
        %v383 = vld [vmem:[%s3 + $0x20] sm:$0xf]
        %v384 = vld [vmem:[%s3 + $0x24] sm:$0xf]
        %v385 = vld [vmem:[%s3 + $0x28] sm:$0xf]
        %v386 = vld [vmem:[%s3 + $0x2c] sm:$0xf]
        %v387 = vld [vmem:[%s3 + $0x30] sm:$0xf]
        %v388 = vld [vmem:[%s3 + $0x34] sm:$0xf]
        %v389 = vld [vmem:[%s3 + $0x38] sm:$0xf]
        %v390 = vld [vmem:[%s3 + $0x3c] sm:$0xf]
        %v391 = vlaneseq
        %v392 = vshrl.u32 %v391, 7
        %v393 = vsub.s32 0, %v392
        %v394 = vrot.slane %v291, %v393
        %v411 = vunpack.c.l.b16 %v375
        %v412 = vunpack.c.l.b16 %v376
        %v413 = vunpack.c.l.b16 %v377
        %v414 = vunpack.c.l.b16 %v378
        %v415 = vunpack.c.l.b16 %v379
        %v416 = vunpack.c.l.b16 %v380
        %v417 = vunpack.c.l.b16 %v381
        %v418 = vunpack.c.l.b16 %v382
        %v419 = vunpack.c.l.b16 %v383
        %v420 = vunpack.c.l.b16 %v384
        %v421 = vunpack.c.l.b16 %v385
        %v422 = vunpack.c.l.b16 %v386
        %v423 = vunpack.c.l.b16 %v387
        %v424 = vunpack.c.l.b16 %v388
        %v425 = vunpack.c.l.b16 %v389
        %v426 = vunpack.c.l.b16 %v390
        %v427 = vpack.c.b16 %v412, %v411
        %v428 = vpack.c.b16 %v414, %v413
        %v429 = vpack.c.b16 %v416, %v415
        %v430 = vpack.c.b16 %v418, %v417
        %v431 = vpack.c.b16 %v420, %v419
        %v432 = vpack.c.b16 %v422, %v421
        %v433 = vpack.c.b16 %v424, %v423
        %v434 = vpack.c.b16 %v426, %v425
        %443 = vmatprep.subr.bf16.mxu0 0
        %444 = vmatpush1.bf16.msra.mxu0 %v427
        %445 = vmatprep.subr.bf16.mxu0 0
        %446 = vmatpush1.bf16.msra.mxu0 %v428
        %447 = vmatprep.subr.bf16.mxu0 0
        %448 = vmatpush1.bf16.msra.mxu0 %v429
        %449 = vmatprep.subr.bf16.mxu0 0
        %450 = vmatpush1.bf16.msra.mxu0 %v430
        %451 = vmatprep.subr.bf16.mxu0 0
        %452 = vmatpush1.bf16.msra.mxu0 %v431
        %453 = vmatprep.subr.bf16.mxu0 0
        %454 = vmatpush1.bf16.msra.mxu0 %v432
        %455 = vmatprep.subr.bf16.mxu0 0
        %456 = vmatpush1.bf16.msra.mxu0 %v433
        %457 = vmatprep.subr.bf16.mxu0 0
        %458 = vmatpush1.bf16.msra.mxu0 %v434
        %459 = vmatprep.subr.bf16.mxu0 0
        %460 = vmatpush1.bf16.msra.mxu0 0
        %461 = vmatprep.subr.bf16.mxu0 0
        %462 = vmatpush1.bf16.msra.mxu0 0
        %463 = vmatprep.subr.bf16.mxu0 0
        %464 = vmatpush1.bf16.msra.mxu0 0
        %465 = vmatprep.subr.bf16.mxu0 0
        %466 = vmatpush1.bf16.msra.mxu0 0
        %467 = vmatprep.subr.bf16.mxu0 0
        %468 = vmatpush1.bf16.msra.mxu0 0
        %469 = vmatprep.subr.bf16.mxu0 0
        %470 = vmatpush1.bf16.msra.mxu0 0
        %471 = vmatprep.subr.bf16.mxu0 0
        %472 = vmatpush1.bf16.msra.mxu0 0
        %473 = vmatprep.subr.bf16.mxu0 0
        %474 = vmatpush1.bf16.msra.mxu0 0
        %475 = vmatprep.mubr.bf16.mxu0 0
        %476 = vmatmul.mubr.bf16.gmra.mrb[0].mxu0 %v374
        %v477 = vpop.f32.mrb[0].mxu0
        %v478 = vadd.f32 %v394, %v477
        %v479 = vpop.f32.mrb[0].mxu0
        %v480 = vpop.f32.mrb[0].mxu0
        %v481 = vadd.f32 %v394, %v480
        %v482 = vpop.f32.mrb[0].mxu0
        %483 = vdwg.mxu0
        %vm484 = vcmask 64512
        %v485 = vsel %vm484, %v478, -inf
        %486 = vmax.xlane.f32.xlu0 %v485
        %v487 = vpop.xlane.xlu0 %486
        %v488 = vsel %vm484, %v481, -inf
        %489 = vmax.xlane.f32.xlu0 %v488
        %v490 = vpop.xlane.xlu0 %489
        %v491 = vsub.f32 %v478, %v487
        %v492 = vsub.f32 %v481, %v490
        %v493 = vmul.f32 %v491, 1.442695
        %v494 = vpow.pop %v493
        %v495 = vmul.f32 %v492, 1.442695
        %v496 = vpow.pop %v495
        %v497 = vsel %vm484, %v494, 0.0
        %498 = vadd.xlane.f32.xlu0 %v497
        %v499 = vpop.xlane.xlu0 %498
        %v500 = vsel %vm484, %v496, 0.0
        %501 = vadd.xlane.f32.xlu0 %v500
        %v502 = vpop.xlane.xlu0 %501
        %v503 = vrcp.pop %v499
        %v504 = vrcp.pop %v502
        %v505 = vmul.f32 %v499, %v503
        %v506 = vmul.f32 %v502, %v504
        %v507 = vsub.f32 2.0, %v505
        %v508 = vsub.f32 2.0, %v506
        %v509 = vmul.f32 %v503, %v507
        %v510 = vmul.f32 %v504, %v508
        %v511 = vmul.f32 %v494, %v509
        %v512 = vmul.f32 %v496, %v510
        %s513 = scalar_lea.vmem %s257, 8 [#allocation2]
        %v514 = vld [vmem:[%s513] sm:$0xf]
        %v515 = vld [vmem:[%s513 + $0x4] sm:$0xf]
        %s516 = scalar_lea.vmem %s1, 24
        %v517 = vld [vmem:[%s516] sm:$0xf]
        %v518 = vld [vmem:[%s516 + $0x4] sm:$0xf]
        %v519 = vld [vmem:[%s516 + $0x8] sm:$0xf]
        %v520 = vld [vmem:[%s516 + $0xc] sm:$0xf]
        %v521 = vld [vmem:[%s516 + $0x10] sm:$0xf]
        %v522 = vld [vmem:[%s516 + $0x14] sm:$0xf]
        %v523 = vlaneseq
        %v524 = vshrl.u32 %v523, 7
        %v525 = vsub.s32 1, %v524
        %v526 = vrot.slane %v290, %v525
        %v529 = vunpack.c.l.b16 %v514
        %v530 = vunpack.c.l.b16 %v515
        %v531 = vpack.c.b16 %v530, %v529
        %v538 = vunpack.c.l.b16 %v517
        %v539 = vunpack.c.l.b16 %v518
        %v540 = vunpack.c.l.b16 %v519
        %v541 = vunpack.c.l.b16 %v520
        %v542 = vunpack.c.l.b16 %v521
        %v543 = vunpack.c.l.b16 %v522
        %v544 = vpack.c.b16 %v539, %v538
        %v545 = vpack.c.b16 %v541, %v540
        %v546 = vpack.c.b16 %v543, %v542
        %v551 = vsel %vm327, %v531, 0
        %553 = vmatprep.subr.bf16.mxu0 0
        %554 = vmatpush1.bf16.msra.mxu0 %v544
        %555 = vmatprep.subr.bf16.mxu0 0
        %556 = vmatpush1.bf16.msra.mxu0 %v545
        %557 = vmatprep.subr.bf16.mxu0 0
        %558 = vmatpush1.bf16.msra.mxu0 %v546
        %559 = vmatprep.subr.bf16.mxu0 0
        %560 = vmatpush1.bf16.msra.mxu0 0
        %561 = vmatprep.subr.bf16.mxu0 0
        %562 = vmatpush1.bf16.msra.mxu0 0
        %563 = vmatprep.subr.bf16.mxu0 0
        %564 = vmatpush1.bf16.msra.mxu0 0
        %565 = vmatprep.subr.bf16.mxu0 0
        %566 = vmatpush1.bf16.msra.mxu0 0
        %567 = vmatprep.subr.bf16.mxu0 0
        %568 = vmatpush1.bf16.msra.mxu0 0
        %569 = vmatprep.subr.bf16.mxu0 0
        %570 = vmatpush1.bf16.msra.mxu0 0
        %571 = vmatprep.subr.bf16.mxu0 0
        %572 = vmatpush1.bf16.msra.mxu0 0
        %573 = vmatprep.subr.bf16.mxu0 0
        %574 = vmatpush1.bf16.msra.mxu0 0
        %575 = vmatprep.subr.bf16.mxu0 0
        %576 = vmatpush1.bf16.msra.mxu0 0
        %577 = vmatprep.subr.bf16.mxu0 0
        %578 = vmatpush1.bf16.msra.mxu0 0
        %579 = vmatprep.subr.bf16.mxu0 0
        %580 = vmatpush1.bf16.msra.mxu0 0
        %581 = vmatprep.subr.bf16.mxu0 0
        %582 = vmatpush1.bf16.msra.mxu0 0
        %583 = vmatprep.subr.bf16.mxu0 0
        %584 = vmatpush1.bf16.msra.mxu0 0
        %585 = vmatprep.mubr.bf16.mxu0 0
        %586 = vmatmul.mubr.bf16.gmra.mrb[0].mxu0 %v551
        %v587 = vpop.f32.mrb[0].mxu0
        %v588 = vadd.f32 %v526, %v587
        %v589 = vpop.f32.mrb[0].mxu0
        %v590 = vpop.f32.mrb[0].mxu0
        %v591 = vadd.f32 %v526, %v590
        %v592 = vpop.f32.mrb[0].mxu0
        %593 = vdwg.mxu0
        %v594 = vmax.f32 %v588, 0.0
        %v595 = vmax.f32 %v591, 0.0
        %v596 = vpack.c.bf16 %v595, %v594
        %s597 = scalar_lea.vmem %s3, 64
        %v598 = vld [vmem:[%s597] sm:$0xf]
        %v599 = vld [vmem:[%s597 + $0x4] sm:$0xf]
        %v600 = vld [vmem:[%s597 + $0x8] sm:$0xf]
        %v601 = vld [vmem:[%s597 + $0xc] sm:$0xf]
        %v602 = vld [vmem:[%s597 + $0x10] sm:$0xf]
        %v603 = vld [vmem:[%s597 + $0x14] sm:$0xf]
        %v604 = vld [vmem:[%s597 + $0x18] sm:$0xf]
        %v605 = vld [vmem:[%s597 + $0x1c] sm:$0xf]
        %v606 = vld [vmem:[%s597 + $0x20] sm:$0xf]
        %v607 = vld [vmem:[%s597 + $0x24] sm:$0xf]
        %v608 = vld [vmem:[%s597 + $0x28] sm:$0xf]
        %v609 = vld [vmem:[%s597 + $0x2c] sm:$0xf]
        %v610 = vld [vmem:[%s597 + $0x30] sm:$0xf]
        %v611 = vld [vmem:[%s597 + $0x34] sm:$0xf]
        %v612 = vld [vmem:[%s597 + $0x38] sm:$0xf]
        %v613 = vld [vmem:[%s597 + $0x3c] sm:$0xf]
        %v614 = vlaneseq
        %v615 = vshrl.u32 %v614, 7
        %v616 = vsub.s32 1, %v615
        %v617 = vrot.slane %v291, %v616
        %v634 = vunpack.c.l.b16 %v598
        %v635 = vunpack.c.l.b16 %v599
        %v636 = vunpack.c.l.b16 %v600
        %v637 = vunpack.c.l.b16 %v601
        %v638 = vunpack.c.l.b16 %v602
        %v639 = vunpack.c.l.b16 %v603
        %v640 = vunpack.c.l.b16 %v604
        %v641 = vunpack.c.l.b16 %v605
        %v642 = vunpack.c.l.b16 %v606
        %v643 = vunpack.c.l.b16 %v607
        %v644 = vunpack.c.l.b16 %v608
        %v645 = vunpack.c.l.b16 %v609
        %v646 = vunpack.c.l.b16 %v610
        %v647 = vunpack.c.l.b16 %v611
        %v648 = vunpack.c.l.b16 %v612
        %v649 = vunpack.c.l.b16 %v613
        %v650 = vpack.c.b16 %v635, %v634
        %v651 = vpack.c.b16 %v637, %v636
        %v652 = vpack.c.b16 %v639, %v638
        %v653 = vpack.c.b16 %v641, %v640
        %v654 = vpack.c.b16 %v643, %v642
        %v655 = vpack.c.b16 %v645, %v644
        %v656 = vpack.c.b16 %v647, %v646
        %v657 = vpack.c.b16 %v649, %v648
        %666 = vmatprep.subr.bf16.mxu0 0
        %667 = vmatpush1.bf16.msra.mxu0 %v650
        %668 = vmatprep.subr.bf16.mxu0 0
        %669 = vmatpush1.bf16.msra.mxu0 %v651
        %670 = vmatprep.subr.bf16.mxu0 0
        %671 = vmatpush1.bf16.msra.mxu0 %v652
        %672 = vmatprep.subr.bf16.mxu0 0
        %673 = vmatpush1.bf16.msra.mxu0 %v653
        %674 = vmatprep.subr.bf16.mxu0 0
        %675 = vmatpush1.bf16.msra.mxu0 %v654
        %676 = vmatprep.subr.bf16.mxu0 0
        %677 = vmatpush1.bf16.msra.mxu0 %v655
        %678 = vmatprep.subr.bf16.mxu0 0
        %679 = vmatpush1.bf16.msra.mxu0 %v656
        %680 = vmatprep.subr.bf16.mxu0 0
        %681 = vmatpush1.bf16.msra.mxu0 %v657
        %682 = vmatprep.subr.bf16.mxu0 0
        %683 = vmatpush1.bf16.msra.mxu0 0
        %684 = vmatprep.subr.bf16.mxu0 0
        %685 = vmatpush1.bf16.msra.mxu0 0
        %686 = vmatprep.subr.bf16.mxu0 0
        %687 = vmatpush1.bf16.msra.mxu0 0
        %688 = vmatprep.subr.bf16.mxu0 0
        %689 = vmatpush1.bf16.msra.mxu0 0
        %690 = vmatprep.subr.bf16.mxu0 0
        %691 = vmatpush1.bf16.msra.mxu0 0
        %692 = vmatprep.subr.bf16.mxu0 0
        %693 = vmatpush1.bf16.msra.mxu0 0
        %694 = vmatprep.subr.bf16.mxu0 0
        %695 = vmatpush1.bf16.msra.mxu0 0
        %696 = vmatprep.subr.bf16.mxu0 0
        %697 = vmatpush1.bf16.msra.mxu0 0
        %698 = vmatprep.mubr.bf16.mxu0 0
        %699 = vmatmul.mubr.bf16.gmra.mrb[0].mxu0 %v596
        %v700 = vpop.f32.mrb[0].mxu0
        %v701 = vadd.f32 %v617, %v700
        %v702 = vpop.f32.mrb[0].mxu0
        %v703 = vpop.f32.mrb[0].mxu0
        %v704 = vadd.f32 %v617, %v703
        %v705 = vpop.f32.mrb[0].mxu0
        %706 = vdwg.mxu0
        %v707 = vsel %vm484, %v701, -inf
        %708 = vmax.xlane.f32.xlu0 %v707
        %v709 = vpop.xlane.xlu0 %708
        %v710 = vsel %vm484, %v704, -inf
        %711 = vmax.xlane.f32.xlu0 %v710
        %v712 = vpop.xlane.xlu0 %711
        %v713 = vsub.f32 %v701, %v709
        %v714 = vsub.f32 %v704, %v712
        %v715 = vmul.f32 %v713, 1.442695
        %v716 = vpow.pop %v715
        %v717 = vmul.f32 %v714, 1.442695
        %v718 = vpow.pop %v717
        %v719 = vsel %vm484, %v716, 0.0
        %720 = vadd.xlane.f32.xlu0 %v719
        %v721 = vpop.xlane.xlu0 %720
        %v722 = vsel %vm484, %v718, 0.0
        %723 = vadd.xlane.f32.xlu0 %v722
        %v724 = vpop.xlane.xlu0 %723
        %v725 = vrcp.pop %v721
        %v726 = vrcp.pop %v724
        %v727 = vmul.f32 %v721, %v725
        %v728 = vmul.f32 %v724, %v726
        %v729 = vsub.f32 2.0, %v727
        %v730 = vsub.f32 2.0, %v728
        %v731 = vmul.f32 %v725, %v729
        %v732 = vmul.f32 %v726, %v730
        %v733 = vmul.f32 %v716, %v731
        %v734 = vmul.f32 %v718, %v732
        %v735 = vadd.f32 %v511, %v733
        %v736 = vadd.f32 %v512, %v734
        %s737 = scalar_lea.vmem %s257, 16 [#allocation2]
        %v738 = vld [vmem:[%s737] sm:$0xf]
        %v739 = vld [vmem:[%s737 + $0x4] sm:$0xf]
        %s740 = scalar_lea.vmem %s1, 48
        %v741 = vld [vmem:[%s740] sm:$0xf]
        %v742 = vld [vmem:[%s740 + $0x4] sm:$0xf]
        %v743 = vld [vmem:[%s740 + $0x8] sm:$0xf]
        %v744 = vld [vmem:[%s740 + $0xc] sm:$0xf]
        %v745 = vld [vmem:[%s740 + $0x10] sm:$0xf]
        %v746 = vld [vmem:[%s740 + $0x14] sm:$0xf]
        %v747 = vlaneseq
        %v748 = vshrl.u32 %v747, 7
        %v749 = vsub.s32 2, %v748
        %v750 = vrot.slane %v290, %v749
        %v753 = vunpack.c.l.b16 %v738
        %v754 = vunpack.c.l.b16 %v739
        %v755 = vpack.c.b16 %v754, %v753
        %v762 = vunpack.c.l.b16 %v741
        %v763 = vunpack.c.l.b16 %v742
        %v764 = vunpack.c.l.b16 %v743
        %v765 = vunpack.c.l.b16 %v744
        %v766 = vunpack.c.l.b16 %v745
        %v767 = vunpack.c.l.b16 %v746
        %v768 = vpack.c.b16 %v763, %v762
        %v769 = vpack.c.b16 %v765, %v764
        %v770 = vpack.c.b16 %v767, %v766
        %v775 = vsel %vm327, %v755, 0
        %777 = vmatprep.subr.bf16.mxu0 0
        %778 = vmatpush1.bf16.msra.mxu0 %v768
        %779 = vmatprep.subr.bf16.mxu0 0
        %780 = vmatpush1.bf16.msra.mxu0 %v769
        %781 = vmatprep.subr.bf16.mxu0 0
        %782 = vmatpush1.bf16.msra.mxu0 %v770
        %783 = vmatprep.subr.bf16.mxu0 0
        %784 = vmatpush1.bf16.msra.mxu0 0
        %785 = vmatprep.subr.bf16.mxu0 0
        %786 = vmatpush1.bf16.msra.mxu0 0
        %787 = vmatprep.subr.bf16.mxu0 0
        %788 = vmatpush1.bf16.msra.mxu0 0
        %789 = vmatprep.subr.bf16.mxu0 0
        %790 = vmatpush1.bf16.msra.mxu0 0
        %791 = vmatprep.subr.bf16.mxu0 0
        %792 = vmatpush1.bf16.msra.mxu0 0
        %793 = vmatprep.subr.bf16.mxu0 0
        %794 = vmatpush1.bf16.msra.mxu0 0
        %795 = vmatprep.subr.bf16.mxu0 0
        %796 = vmatpush1.bf16.msra.mxu0 0
        %797 = vmatprep.subr.bf16.mxu0 0
        %798 = vmatpush1.bf16.msra.mxu0 0
        %799 = vmatprep.subr.bf16.mxu0 0
        %800 = vmatpush1.bf16.msra.mxu0 0
        %801 = vmatprep.subr.bf16.mxu0 0
        %802 = vmatpush1.bf16.msra.mxu0 0
        %803 = vmatprep.subr.bf16.mxu0 0
        %804 = vmatpush1.bf16.msra.mxu0 0
        %805 = vmatprep.subr.bf16.mxu0 0
        %806 = vmatpush1.bf16.msra.mxu0 0
        %807 = vmatprep.subr.bf16.mxu0 0
        %808 = vmatpush1.bf16.msra.mxu0 0
        %809 = vmatprep.mubr.bf16.mxu0 0
        %810 = vmatmul.mubr.bf16.gmra.mrb[0].mxu0 %v775
        %v811 = vpop.f32.mrb[0].mxu0
        %v812 = vadd.f32 %v750, %v811
        %v813 = vpop.f32.mrb[0].mxu0
        %v814 = vpop.f32.mrb[0].mxu0
        %v815 = vadd.f32 %v750, %v814
        %v816 = vpop.f32.mrb[0].mxu0
        %817 = vdwg.mxu0
        %v818 = vmax.f32 %v812, 0.0
        %v819 = vmax.f32 %v815, 0.0
        %v820 = vpack.c.bf16 %v819, %v818
        %s821 = scalar_lea.vmem %s3, 128
        %v822 = vld [vmem:[%s821] sm:$0xf]
        %v823 = vld [vmem:[%s821 + $0x4] sm:$0xf]
        %v824 = vld [vmem:[%s821 + $0x8] sm:$0xf]
        %v825 = vld [vmem:[%s821 + $0xc] sm:$0xf]
        %v826 = vld [vmem:[%s821 + $0x10] sm:$0xf]
        %v827 = vld [vmem:[%s821 + $0x14] sm:$0xf]
        %v828 = vld [vmem:[%s821 + $0x18] sm:$0xf]
        %v829 = vld [vmem:[%s821 + $0x1c] sm:$0xf]
        %v830 = vld [vmem:[%s821 + $0x20] sm:$0xf]
        %v831 = vld [vmem:[%s821 + $0x24] sm:$0xf]
        %v832 = vld [vmem:[%s821 + $0x28] sm:$0xf]
        %v833 = vld [vmem:[%s821 + $0x2c] sm:$0xf]
        %v834 = vld [vmem:[%s821 + $0x30] sm:$0xf]
        %v835 = vld [vmem:[%s821 + $0x34] sm:$0xf]
        %v836 = vld [vmem:[%s821 + $0x38] sm:$0xf]
        %v837 = vld [vmem:[%s821 + $0x3c] sm:$0xf]
        %v838 = vlaneseq
        %v839 = vshrl.u32 %v838, 7
        %v840 = vsub.s32 2, %v839
        %v841 = vrot.slane %v291, %v840
        %v858 = vunpack.c.l.b16 %v822
        %v859 = vunpack.c.l.b16 %v823
        %v860 = vunpack.c.l.b16 %v824
        %v861 = vunpack.c.l.b16 %v825
        %v862 = vunpack.c.l.b16 %v826
        %v863 = vunpack.c.l.b16 %v827
        %v864 = vunpack.c.l.b16 %v828
        %v865 = vunpack.c.l.b16 %v829
        %v866 = vunpack.c.l.b16 %v830
        %v867 = vunpack.c.l.b16 %v831
        %v868 = vunpack.c.l.b16 %v832
        %v869 = vunpack.c.l.b16 %v833
        %v870 = vunpack.c.l.b16 %v834
        %v871 = vunpack.c.l.b16 %v835
        %v872 = vunpack.c.l.b16 %v836
        %v873 = vunpack.c.l.b16 %v837
        %v874 = vpack.c.b16 %v859, %v858
        %v875 = vpack.c.b16 %v861, %v860
        %v876 = vpack.c.b16 %v863, %v862
        %v877 = vpack.c.b16 %v865, %v864
        %v878 = vpack.c.b16 %v867, %v866
        %v879 = vpack.c.b16 %v869, %v868
        %v880 = vpack.c.b16 %v871, %v870
        %v881 = vpack.c.b16 %v873, %v872
        %890 = vmatprep.subr.bf16.mxu0 0
        %891 = vmatpush1.bf16.msra.mxu0 %v874
        %892 = vmatprep.subr.bf16.mxu0 0
        %893 = vmatpush1.bf16.msra.mxu0 %v875
        %894 = vmatprep.subr.bf16.mxu0 0
        %895 = vmatpush1.bf16.msra.mxu0 %v876
        %896 = vmatprep.subr.bf16.mxu0 0
        %897 = vmatpush1.bf16.msra.mxu0 %v877
        %898 = vmatprep.subr.bf16.mxu0 0
        %899 = vmatpush1.bf16.msra.mxu0 %v878
        %900 = vmatprep.subr.bf16.mxu0 0
        %901 = vmatpush1.bf16.msra.mxu0 %v879
        %902 = vmatprep.subr.bf16.mxu0 0
        %903 = vmatpush1.bf16.msra.mxu0 %v880
        %904 = vmatprep.subr.bf16.mxu0 0
        %905 = vmatpush1.bf16.msra.mxu0 %v881
        %906 = vmatprep.subr.bf16.mxu0 0
        %907 = vmatpush1.bf16.msra.mxu0 0
        %908 = vmatprep.subr.bf16.mxu0 0
        %909 = vmatpush1.bf16.msra.mxu0 0
        %910 = vmatprep.subr.bf16.mxu0 0
        %911 = vmatpush1.bf16.msra.mxu0 0
        %912 = vmatprep.subr.bf16.mxu0 0
        %913 = vmatpush1.bf16.msra.mxu0 0
        %914 = vmatprep.subr.bf16.mxu0 0
        %915 = vmatpush1.bf16.msra.mxu0 0
        %916 = vmatprep.subr.bf16.mxu0 0
        %917 = vmatpush1.bf16.msra.mxu0 0
        %918 = vmatprep.subr.bf16.mxu0 0
        %919 = vmatpush1.bf16.msra.mxu0 0
        %920 = vmatprep.subr.bf16.mxu0 0
        %921 = vmatpush1.bf16.msra.mxu0 0
        %922 = vmatprep.mubr.bf16.mxu0 0
        %923 = vmatmul.mubr.bf16.gmra.mrb[0].mxu0 %v820
        %v924 = vpop.f32.mrb[0].mxu0
        %v925 = vadd.f32 %v841, %v924
        %v926 = vpop.f32.mrb[0].mxu0
        %v927 = vpop.f32.mrb[0].mxu0
        %v928 = vadd.f32 %v841, %v927
        %v929 = vpop.f32.mrb[0].mxu0
        %930 = vdwg.mxu0
        %v931 = vsel %vm484, %v925, -inf
        %932 = vmax.xlane.f32.xlu0 %v931
        %v933 = vpop.xlane.xlu0 %932
        %v934 = vsel %vm484, %v928, -inf
        %935 = vmax.xlane.f32.xlu0 %v934
        %v936 = vpop.xlane.xlu0 %935
        %v937 = vsub.f32 %v925, %v933
        %v938 = vsub.f32 %v928, %v936
        %v939 = vmul.f32 %v937, 1.442695
        %v940 = vpow.pop %v939
        %v941 = vmul.f32 %v938, 1.442695
        %v942 = vpow.pop %v941
        %v943 = vsel %vm484, %v940, 0.0
        %944 = vadd.xlane.f32.xlu0 %v943
        %v945 = vpop.xlane.xlu0 %944
        %v946 = vsel %vm484, %v942, 0.0
        %947 = vadd.xlane.f32.xlu0 %v946
        %v948 = vpop.xlane.xlu0 %947
        %v949 = vrcp.pop %v945
        %v950 = vrcp.pop %v948
        %v951 = vmul.f32 %v945, %v949
        %v952 = vmul.f32 %v948, %v950
        %v953 = vsub.f32 2.0, %v951
        %v954 = vsub.f32 2.0, %v952
        %v955 = vmul.f32 %v949, %v953
        %v956 = vmul.f32 %v950, %v954
        %v957 = vmul.f32 %v940, %v955
        %v958 = vmul.f32 %v942, %v956
        %v959 = vadd.f32 %v735, %v957
        %v960 = vadd.f32 %v736, %v958
        %v961 = vmul.f32 %v959, 0.33333334
        %v962 = vmul.f32 %v960, 0.33333334
        %v963 = vlog2.pop %v961
        %v964 = vmul.f32 %v963, 0.6931472
        %v965 = vlog2.pop %v962
        %v966 = vmul.f32 %v965, 0.6931472
        %967 = vst.msk [vmem:[%s287] sm:$0xff] %vm484, %v964
        %968 = vst.msk [vmem:[%s287 + $0x8] sm:$0xff] %vm484, %v966
        %s969 = smul.u32 2, %s16
        %p970 = scmp.lt.s32.totalorder %s969, 3
        %s971 = scalar_select %p970, %s969, 3
        %s972 = smul.addr %s971, 8
        %s973 = scalar_lea.vmem %s5, %s972
        // Predicated region
        $region82: #{tpu_custom_call.1} parent=76 // pred_check
          %p974 = pneg %p144
        $region83: #{tpu_custom_call.1} parent=76 // pred_check_branch
          %976 = sbr.rel (%p974) target = $region85
        $region84: #{tpu_custom_call.1} parent=76 // pred_region
          %s977 = smul.u32 2, %s16
        $region85: #{tpu_custom_call.1} parent=76 // pred_fallthru
          _
      $region77: #{tpu_custom_call.1} parent=5 // pred_fallthru
        _
      %p978 = scmp.le.s32.totalorder 2, %s11
      // Predicated region
      $region86: #{tpu_custom_call.1} parent=5 // pred_check
        %p979 = pneg %p978
      $region87: #{tpu_custom_call.1} parent=5 // pred_check_branch
        %981 = sbr.rel (%p979) target = $region89
      $region88: #{tpu_custom_call.1} parent=5 // pred_region
        %s982 = ssub.s32 %s11, 2
        // Predicated region
        $region90: #{tpu_custom_call.1} parent=88 // pred_check
          %p983 = pneg %p150
        $region91: #{tpu_custom_call.1} parent=88 // pred_check_branch
          %985 = sbr.rel (%p983) target = $region93
        $region92: #{tpu_custom_call.1} parent=88 // pred_region
          %s986 = smul.u32 2, %s17
          %p987 = scmp.lt.s32.totalorder %s986, 3
          %s988 = scalar_select %p987, %s986, 3
          %s989 = smul.addr %s988, 8
          %s990 = scalar_lea.vmem %s5, %s989
        $region93: #{tpu_custom_call.1} parent=88 // pred_fallthru
          _
      $region89: #{tpu_custom_call.1} parent=5 // pred_fallthru
        _
    $region6: #{tpu_custom_call.1} parent=1 // loop_footer
      %s15 = sadd.s32 1, %s11
    $region7: #{tpu_custom_call.1} parent=1 // loop_footer_branch
      %10 = sbr.rel target = $region3
    $region8: #{tpu_custom_call.1} parent=1 // loop_exit
      _

// kernel: tpu_custom_call.1
$region0: #{tpu_custom_call.1}
  #allocation0 [shape = 'u32[]', space=smem, size = 0x4, offset = 0x4, fixed_abs, tag = 'smem constant byte address 0x4 - core index']
  #allocation1 [shape = 'u32[144,128]{1,0:T(1,128)}', space=vmem, size = 0x12000, scoped, tag = 'internal scratch']
  %s0 = inlined_call_operand.vmem [shape: bf16[3,32,48], index: 0, kind: input, shape index: {}]
  %s1 = inlined_call_operand.vmem [shape: bf16[3,48,128], index: 1, kind: input, shape index: {}]
  %s2 = inlined_call_operand.vmem [shape: f32[3,128], index: 2, kind: input, shape index: {}]
  %s3 = inlined_call_operand.vmem [shape: bf16[3,128,8], index: 3, kind: input, shape index: {}]
  %s4 = inlined_call_operand.vmem [shape: f32[3,8], index: 4, kind: input, shape index: {}]
  %s5 = inlined_call_operand.vmem [shape: f32[32,8], index: 5, kind: output, shape index: {}]
  %s6 = sld [smem:[#allocation0]]
  $region94: #{tpu_custom_call.1} parent=0
    _
  %s8 = ssub.s32 1, %s6
  %s9 = scalar_select 0, %s8, %s6
  $region1: #{tpu_custom_call.1} parent=0
    #allocation2 [shape = 'u8[24576]{0}', space=vmem, size = 0x6000, scoped, tag = 'input window, operand 0']
    loop: start=0, step=1, limit=4
    $region2: #{tpu_custom_call.1} parent=1 // loop_pre_header
      _
    $region3: #{tpu_custom_call.1} parent=1 // loop_header
      %s11 = sphi 0, %s15
      %p12 = scmp.ge.s32.totalorder %s11, 4
      %s21 = sphi 0, %s23
      %s24 = sphi 0, %s21
      %s25 = sphi 0, %s24
      %s41 = sphi 0, %s25
      %s45 = sphi 0, %s45
      %s47 = sphi 0, %s45
      %s48 = sphi 0, %s47
      %s62 = sphi 0, %s48
      %s66 = sphi 0, %s66
      %s68 = sphi 0, %s66
      %s69 = sphi 0, %s68
      %s83 = sphi 0, %s69
      %s87 = sphi 0, %s87
      %s89 = sphi 0, %s87
      %s90 = sphi 0, %s89
      %s104 = sphi 0, %s90
      %s108 = sphi 0, %s108
      %s110 = sphi 0, %s108
      %s111 = sphi 0, %s110
      %s125 = sphi 0, %s111
      %s131 = sphi 0, %s133
      %s134 = sphi 0, %s131
      %s135 = sphi 0, %s134
      %s151 = sphi 0, %s135
    $region4: #{tpu_custom_call.1} parent=1 // loop_header_branch
      %14 = sbr.rel (%p12) target = $region8
    $region5: #{tpu_custom_call.1} parent=1 // loop_body
      %s16 = ssub.s32 %s11, 1
      %s17 = ssub.s32 %s11, 2
      %s18 = sadd.s32 %s11, 1
      %s19 = ssub.s32 %s11, %s18
      %p20 = scmp.eq.s32.totalorder %s19, 0
      %s22 = sadd.s32 %s21, 1
      %s23 = scalar_select %p20, %s21, %s22
      %p26 = pneg %p20
      %p27 = scmp.eq.s32.totalorder %s11, 1
      %p28 = por %p26, %p27
      %p29 = scmp.ne.s32.totalorder %s21, %s24
      %p30 = scmp.eq.s32.totalorder %s11, 0
      %p31 = por %p29, %p30
      %p32 = scmp.ne.s32.totalorder %s21, %s24
      %p33 = scmp.eq.s32.totalorder %s16, 1
      %p34 = por %p32, %p33
      %p35 = scmp.ne.s32.totalorder %s24, %s25
      %p36 = scmp.eq.s32.totalorder %s16, 0
      %p37 = por %p35, %p36
      %p38 = scmp.ne.s32.totalorder %s24, %s25
      %p39 = scmp.eq.s32.totalorder %s17, 1
      %p40 = por %p38, %p39
      %p42 = scmp.ne.s32.totalorder %s25, %s41
      %p43 = scmp.eq.s32.totalorder %s17, 0
      %p44 = por %p42, %p43
      %s46 = sadd.s32 %s45, 1
      %p49 = scmp.eq.s32.totalorder %s11, 1
      %p50 = scmp.ne.s32.totalorder %s45, %s47
      %p51 = scmp.eq.s32.totalorder %s11, 0
      %p52 = por %p50, %p51
      %p53 = scmp.ne.s32.totalorder %s45, %s47
      %p54 = scmp.eq.s32.totalorder %s16, 1
      %p55 = por %p53, %p54
      %p56 = scmp.ne.s32.totalorder %s47, %s48
      %p57 = scmp.eq.s32.totalorder %s16, 0
      %p58 = por %p56, %p57
      %p59 = scmp.ne.s32.totalorder %s47, %s48
      %p60 = scmp.eq.s32.totalorder %s17, 1
      %p61 = por %p59, %p60
      %p63 = scmp.ne.s32.totalorder %s48, %s62
      %p64 = scmp.eq.s32.totalorder %s17, 0
      %p65 = por %p63, %p64
      %s67 = sadd.s32 %s66, 1
      %p70 = scmp.eq.s32.totalorder %s11, 1
      %p71 = scmp.ne.s32.totalorder %s66, %s68
      %p72 = scmp.eq.s32.totalorder %s11, 0
      %p73 = por %p71, %p72
      %p74 = scmp.ne.s32.totalorder %s66, %s68
      %p75 = scmp.eq.s32.totalorder %s16, 1
      %p76 = por %p74, %p75
      %p77 = scmp.ne.s32.totalorder %s68, %s69
      %p78 = scmp.eq.s32.totalorder %s16, 0
      %p79 = por %p77, %p78
      %p80 = scmp.ne.s32.totalorder %s68, %s69
      %p81 = scmp.eq.s32.totalorder %s17, 1
      %p82 = por %p80, %p81
      %p84 = scmp.ne.s32.totalorder %s69, %s83
      %p85 = scmp.eq.s32.totalorder %s17, 0
      %p86 = por %p84, %p85
      %s88 = sadd.s32 %s87, 1
      %p91 = scmp.eq.s32.totalorder %s11, 1
      %p92 = scmp.ne.s32.totalorder %s87, %s89
      %p93 = scmp.eq.s32.totalorder %s11, 0
      %p94 = por %p92, %p93
      %p95 = scmp.ne.s32.totalorder %s87, %s89
      %p96 = scmp.eq.s32.totalorder %s16, 1
      %p97 = por %p95, %p96
      %p98 = scmp.ne.s32.totalorder %s89, %s90
      %p99 = scmp.eq.s32.totalorder %s16, 0
      %p100 = por %p98, %p99
      %p101 = scmp.ne.s32.totalorder %s89, %s90
      %p102 = scmp.eq.s32.totalorder %s17, 1
      %p103 = por %p101, %p102
      %p105 = scmp.ne.s32.totalorder %s90, %s104
      %p106 = scmp.eq.s32.totalorder %s17, 0
      %p107 = por %p105, %p106
      %s109 = sadd.s32 %s108, 1
      %p112 = scmp.eq.s32.totalorder %s11, 1
      %p113 = scmp.ne.s32.totalorder %s108, %s110
      %p114 = scmp.eq.s32.totalorder %s11, 0
      %p115 = por %p113, %p114
      %p116 = scmp.ne.s32.totalorder %s108, %s110
      %p117 = scmp.eq.s32.totalorder %s16, 1
      %p118 = por %p116, %p117
      %p119 = scmp.ne.s32.totalorder %s110, %s111
      %p120 = scmp.eq.s32.totalorder %s16, 0
      %p121 = por %p119, %p120
      %p122 = scmp.ne.s32.totalorder %s110, %s111
      %p123 = scmp.eq.s32.totalorder %s17, 1
      %p124 = por %p122, %p123
      %p126 = scmp.ne.s32.totalorder %s111, %s125
      %p127 = scmp.eq.s32.totalorder %s17, 0
      %p128 = por %p126, %p127
      %s129 = ssub.s32 %s11, %s18
      %p130 = scmp.eq.s32.totalorder %s129, 0
      %s132 = sadd.s32 %s131, 1
      %s133 = scalar_select %p130, %s131, %s132
      %p136 = pneg %p130
      %p137 = scmp.eq.s32.totalorder %s11, 1
      %p138 = por %p136, %p137
      %p139 = scmp.ne.s32.totalorder %s131, %s134
      %p140 = scmp.eq.s32.totalorder %s11, 0
      %p141 = por %p139, %p140
      %p142 = scmp.ne.s32.totalorder %s131, %s134
      %p143 = scmp.eq.s32.totalorder %s16, 1
      %p144 = por %p142, %p143
      %p145 = scmp.ne.s32.totalorder %s134, %s135
      %p146 = scmp.eq.s32.totalorder %s16, 0
      %p147 = por %p145, %p146
      %p148 = scmp.ne.s32.totalorder %s134, %s135
      %p149 = scmp.eq.s32.totalorder %s17, 1
      %p150 = por %p148, %p149
      %p152 = scmp.ne.s32.totalorder %s135, %s151
      %p153 = scmp.eq.s32.totalorder %s17, 0
      %p154 = por %p152, %p153
      %p155 = scmp.le.s32.totalorder 1, %s11
      %p156 = scmp.lt.s32.totalorder %s11, 3
      %p157 = pnand %p155, %p156
      %p158 = pneg %p157
      // Predicated region
      $region9: #{tpu_custom_call.1} parent=5 // pred_check
        _
      $region10: #{tpu_custom_call.1} parent=5 // pred_check_branch
        %160 = sbr.rel (%p157) target = $region12
      $region11: #{tpu_custom_call.1} parent=5 // pred_region
        %s161 = ssub.s32 %s11, 1
        // Predicated region
        $region13: #{tpu_custom_call.1} parent=11 // pred_check
          %p162 = pneg %p58
        $region14: #{tpu_custom_call.1} parent=11 // pred_check_branch
          %164 = sbr.rel (%p162) target = $region16
        $region15: #{tpu_custom_call.1} parent=11 // pred_region
          _
        $region16: #{tpu_custom_call.1} parent=11 // pred_fallthru
          _
        // Predicated region
        $region17: #{tpu_custom_call.1} parent=11 // pred_check
          %p165 = pneg %p79
        $region18: #{tpu_custom_call.1} parent=11 // pred_check_branch
          %167 = sbr.rel (%p165) target = $region20
        $region19: #{tpu_custom_call.1} parent=11 // pred_region
          _
        $region20: #{tpu_custom_call.1} parent=11 // pred_fallthru
          _
        // Predicated region
        $region21: #{tpu_custom_call.1} parent=11 // pred_check
          %p168 = pneg %p100
        $region22: #{tpu_custom_call.1} parent=11 // pred_check_branch
          %170 = sbr.rel (%p168) target = $region24
        $region23: #{tpu_custom_call.1} parent=11 // pred_region
          _
        $region24: #{tpu_custom_call.1} parent=11 // pred_fallthru
          _
        // Predicated region
        $region25: #{tpu_custom_call.1} parent=11 // pred_check
          %p171 = pneg %p121
        $region26: #{tpu_custom_call.1} parent=11 // pred_check_branch
          %173 = sbr.rel (%p171) target = $region28
        $region27: #{tpu_custom_call.1} parent=11 // pred_region
          _
        $region28: #{tpu_custom_call.1} parent=11 // pred_fallthru
          _
      $region12: #{tpu_custom_call.1} parent=5 // pred_fallthru
        _
      %p174 = scmp.lt.s32.totalorder %s11, 2
      // Predicated region
      $region29: #{tpu_custom_call.1} parent=5 // pred_check
        %p175 = pneg %p174
      $region30: #{tpu_custom_call.1} parent=5 // pred_check_branch
        %177 = sbr.rel (%p175) target = $region32
      $region31: #{tpu_custom_call.1} parent=5 // pred_region
        // Predicated region
        $region33: #{tpu_custom_call.1} parent=31 // pred_check
          %p178 = pneg %p31
        $region34: #{tpu_custom_call.1} parent=31 // pred_check_branch
          %180 = sbr.rel (%p178) target = $region36
        $region35: #{tpu_custom_call.1} parent=31 // pred_region
          %s181 = sand.u32 %s21, 1
          %s182 = sand.u32 %s21, 1
          %s183 = smul.addr %s182, 24
          %s184 = scalar_lea.vmem [#allocation2], %s183
          %s185 = smul.u32 2, %s11
          %s186 = smul.addr %s185, 4
          %s187 = scalar_lea.vmem %s0, %s186
          // Predicated region
          $region37: #{tpu_custom_call.1} parent=35 // pred_check
            _
          $region38: #{tpu_custom_call.1} parent=35 // pred_check_branch
            %189 = sbr.rel (0) target = $region40
          $region39: #{tpu_custom_call.1} parent=35 // pred_region
            // Predicated region
            $region41: #{tpu_custom_call.1} parent=39 // pred_check
              _
            $region42: #{tpu_custom_call.1} parent=39 // pred_check_branch
              %191 = sbr.rel target = $region44
            $region43: #{tpu_custom_call.1} parent=39 // pred_region
              // Predicated region
              $region56: #{tpu_custom_call.1} parent=43 // pred_check
                _
              $region57: #{tpu_custom_call.1} parent=43 // pred_check_branch
                %216 = sbr.rel (0) target = $region59
              $region58: #{tpu_custom_call.1} parent=43 // pred_region
                loop: start=0, step=1, limit=1
                $region60: #{tpu_custom_call.1} parent=58 // loop_pre_header
                  _
                $region61: #{tpu_custom_call.1} parent=58 // loop_header
                  %s218 = sphi 0, %s222
                  %p219 = scmp.ge.s32.totalorder %s218, 1
                  %s223 = sphi %s187, %s187
                  %s224 = sphi %s184, %s184
                $region62: #{tpu_custom_call.1} parent=58 // loop_header_branch
                  %221 = sbr.rel (%p219) target = $region66
                $region63: #{tpu_custom_call.1} parent=58 // loop_body
                  _
                $region64: #{tpu_custom_call.1} parent=58 // loop_footer
                  %s222 = sadd.s32 1, %s218
                $region65: #{tpu_custom_call.1} parent=58 // loop_footer_branch
                  %217 = sbr.rel target = $region61
                $region66: #{tpu_custom_call.1} parent=58 // loop_exit
                  _
                loop: start=0, step=1, limit=1
                $region67: #{tpu_custom_call.1} parent=58 // loop_pre_header
                  _
                $region68: #{tpu_custom_call.1} parent=58 // loop_header
                  %s227 = sphi 0, %s231
                  %p228 = scmp.ge.s32.totalorder %s227, 1
                  %s232 = sphi %s187, %s187
                  %s233 = sphi %s184, %s184
                $region69: #{tpu_custom_call.1} parent=58 // loop_header_branch
                  %230 = sbr.rel (%p228) target = $region73
                $region70: #{tpu_custom_call.1} parent=58 // loop_body
                  %v234 = vld [vmem:[%s232] sm:$0xf]
                  %235 = vst [vmem:[%s233] sm:$0xf] %v234
                  %v236 = vld [vmem:[%s232 + $0x4] sm:$0xf]
                  %237 = vst [vmem:[%s233 + $0x4] sm:$0xf] %v236
                  %v238 = vld [vmem:[%s232 + $0x10] sm:$0xf]
                  %239 = vst [vmem:[%s233 + $0x8] sm:$0xf] %v238
                  %v240 = vld [vmem:[%s232 + $0x14] sm:$0xf]
                  %241 = vst [vmem:[%s233 + $0xc] sm:$0xf] %v240
                  %v242 = vld [vmem:[%s232 + $0x20] sm:$0xf]
                  %243 = vst [vmem:[%s233 + $0x10] sm:$0xf] %v242
                  %v244 = vld [vmem:[%s232 + $0x24] sm:$0xf]
                  %245 = vst [vmem:[%s233 + $0x14] sm:$0xf] %v244
                $region71: #{tpu_custom_call.1} parent=58 // loop_footer
                  %s231 = sadd.s32 1, %s227
                $region72: #{tpu_custom_call.1} parent=58 // loop_footer_branch
                  %226 = sbr.rel target = $region68
                $region73: #{tpu_custom_call.1} parent=58 // loop_exit
                  _
              $region59: #{tpu_custom_call.1} parent=43 // pred_fallthru
                _
            $region44: #{tpu_custom_call.1} parent=39 // pred_fallthru
              _
            // Predicated region
            $region45: #{tpu_custom_call.1} parent=39 // pred_check
              _
            $region46: #{tpu_custom_call.1} parent=39 // pred_check_branch
              %193 = sbr.rel (0) target = $region48
            $region47: #{tpu_custom_call.1} parent=39 // pred_region
              loop: start=0, step=1, limit=1
              $region49: #{tpu_custom_call.1} parent=47 // loop_pre_header
                _
              $region50: #{tpu_custom_call.1} parent=47 // loop_header
                %s196 = sphi 0, %s200
                %p197 = scmp.ge.s32.totalorder %s196, 1
                %s201 = sphi %s187, %s187
                %s202 = sphi %s184, %s184
              $region51: #{tpu_custom_call.1} parent=47 // loop_header_branch
                %199 = sbr.rel (%p197) target = $region55
              $region52: #{tpu_custom_call.1} parent=47 // loop_body
                %v203 = vld [vmem:[%s201] sm:$0xf]
                %204 = vst [vmem:[%s202] sm:$0xf] %v203
                %v205 = vld [vmem:[%s201 + $0x4] sm:$0xf]
                %206 = vst [vmem:[%s202 + $0x4] sm:$0xf] %v205
                %v207 = vld [vmem:[%s201 + $0x10] sm:$0xf]
                %208 = vst [vmem:[%s202 + $0x8] sm:$0xf] %v207
                %v209 = vld [vmem:[%s201 + $0x14] sm:$0xf]
                %210 = vst [vmem:[%s202 + $0xc] sm:$0xf] %v209
                %v211 = vld [vmem:[%s201 + $0x20] sm:$0xf]
                %212 = vst [vmem:[%s202 + $0x10] sm:$0xf] %v211
                %v213 = vld [vmem:[%s201 + $0x24] sm:$0xf]
                %214 = vst [vmem:[%s202 + $0x14] sm:$0xf] %v213
              $region53: #{tpu_custom_call.1} parent=47 // loop_footer
                %s200 = sadd.s32 1, %s196
              $region54: #{tpu_custom_call.1} parent=47 // loop_footer_branch
                %195 = sbr.rel target = $region50
              $region55: #{tpu_custom_call.1} parent=47 // loop_exit
                _
            $region48: #{tpu_custom_call.1} parent=39 // pred_fallthru
              _
          $region40: #{tpu_custom_call.1} parent=35 // pred_fallthru
            _
          %246 = vnop
        $region36: #{tpu_custom_call.1} parent=31 // pred_fallthru
          _
      $region32: #{tpu_custom_call.1} parent=5 // pred_fallthru
        _
      %p247 = scmp.le.s32.totalorder 1, %s11
      %p248 = scmp.lt.s32.totalorder %s11, 3
      %p249 = pnand %p247, %p248
      %p250 = pneg %p249
      // Predicated region
      $region74: #{tpu_custom_call.1} parent=5 // pred_check
        _
      $region75: #{tpu_custom_call.1} parent=5 // pred_check_branch
        %252 = sbr.rel (%p249) target = $region77
      $region76: #{tpu_custom_call.1} parent=5 // pred_region
        %s253 = ssub.s32 %s11, 1
        %s254 = sand.u32 %s24, 1
        %s255 = sand.u32 %s24, 1
        %s256 = smul.addr %s255, 24
        %s257 = scalar_lea.vmem [#allocation2], %s256
        // Predicated region
        $region78: #{tpu_custom_call.1} parent=76 // pred_check
          %p258 = pneg %p37
        $region79: #{tpu_custom_call.1} parent=76 // pred_check_branch
          %260 = sbr.rel (%p258) target = $region81
        $region80: #{tpu_custom_call.1} parent=76 // pred_region
          _
        $region81: #{tpu_custom_call.1} parent=76 // pred_fallthru
          _
        %s261 = sand.u32 %s24, 1
        %s262 = sand.u32 %s24, 1
        %s263 = smul.addr %s262, 24
        %s264 = scalar_lea.vmem [#allocation2], %s263
        %p265 = pneg %p37
        %p266 = pneg %p34
        %p267 = pneg %p58
        %p268 = pneg %p55
        %p269 = pneg %p79
        %p270 = pneg %p76
        %p271 = pneg %p100
        %p272 = pneg %p97
        %p273 = pneg %p121
        %p274 = pneg %p118
        %p275 = pneg %p147
        %p276 = pneg %p144
        %s277 = smul.u32 2, %s16
        %p278 = scmp.lt.s32.totalorder %s277, 3
        %s279 = scalar_select %p278, %s277, 3
        %s280 = smul.addr %s279, 8
        %s281 = scalar_lea.vmem %s5, %s280
        %s282 = smul.u32 2, %s16
        %s283 = smul.u32 2, %s16
        %p284 = scmp.lt.s32.totalorder %s283, 3
        %s285 = scalar_select %p284, %s283, 3
        %s286 = smul.addr %s285, 8
        %s287 = scalar_lea.vmem %s5, %s286
        %s288 = smul.u32 2, %s16
        %v290 = vld [vmem:[%s2] sm:$0x7]
        %v291 = vld [vmem:[%s4] sm:$0x7]
        %v292 = vld [vmem:[%s257] sm:$0xf]
        %v293 = vld [vmem:[%s257 + $0x4] sm:$0xf]
        %v294 = vld [vmem:[%s1] sm:$0xf]
        %v295 = vld [vmem:[%s1 + $0x4] sm:$0xf]
        %v296 = vld [vmem:[%s1 + $0x8] sm:$0xf]
        %v297 = vld [vmem:[%s1 + $0xc] sm:$0xf]
        %v298 = vld [vmem:[%s1 + $0x10] sm:$0xf]
        %v299 = vld [vmem:[%s1 + $0x14] sm:$0xf]
        %v300 = vlaneseq
        %v301 = vshrl.u32 %v300, 7
        %v302 = vsub.s32 0, %v301
        %v303 = vrot.slane %v290, %v302
        %v306 = vunpack.c.l.b16 %v292
        %v307 = vunpack.c.l.b16 %v293
        %v308 = vpack.c.b16 %v307, %v306
        %v315 = vunpack.c.l.b16 %v294
        %v316 = vunpack.c.l.b16 %v295
        %v317 = vunpack.c.l.b16 %v296
        %v318 = vunpack.c.l.b16 %v297
        %v319 = vunpack.c.l.b16 %v298
        %v320 = vunpack.c.l.b16 %v299
        %v321 = vpack.c.b16 %v316, %v315
        %v322 = vpack.c.b16 %v318, %v317
        %v323 = vpack.c.b16 %v320, %v319
        %vm327 = vcmask 392192
        %v329 = vsel %vm327, %v308, 0
        %331 = vmatprep.subr.bf16.mxu0 0
        %332 = vmatpush1.bf16.msra.mxu0 %v321
        %333 = vmatprep.subr.bf16.mxu0 0
        %334 = vmatpush1.bf16.msra.mxu0 %v322
        %335 = vmatprep.subr.bf16.mxu0 0
        %336 = vmatpush1.bf16.msra.mxu0 %v323
        %337 = vmatprep.subr.bf16.mxu0 0
        %338 = vmatpush1.bf16.msra.mxu0 0
        %339 = vmatprep.subr.bf16.mxu0 0
        %340 = vmatpush1.bf16.msra.mxu0 0
        %341 = vmatprep.subr.bf16.mxu0 0
        %342 = vmatpush1.bf16.msra.mxu0 0
        %343 = vmatprep.subr.bf16.mxu0 0
        %344 = vmatpush1.bf16.msra.mxu0 0
        %345 = vmatprep.subr.bf16.mxu0 0
        %346 = vmatpush1.bf16.msra.mxu0 0
        %347 = vmatprep.subr.bf16.mxu0 0
        %348 = vmatpush1.bf16.msra.mxu0 0
        %349 = vmatprep.subr.bf16.mxu0 0
        %350 = vmatpush1.bf16.msra.mxu0 0
        %351 = vmatprep.subr.bf16.mxu0 0
        %352 = vmatpush1.bf16.msra.mxu0 0
        %353 = vmatprep.subr.bf16.mxu0 0
        %354 = vmatpush1.bf16.msra.mxu0 0
        %355 = vmatprep.subr.bf16.mxu0 0
        %356 = vmatpush1.bf16.msra.mxu0 0
        %357 = vmatprep.subr.bf16.mxu0 0
        %358 = vmatpush1.bf16.msra.mxu0 0
        %359 = vmatprep.subr.bf16.mxu0 0
        %360 = vmatpush1.bf16.msra.mxu0 0
        %361 = vmatprep.subr.bf16.mxu0 0
        %362 = vmatpush1.bf16.msra.mxu0 0
        %363 = vmatprep.mubr.bf16.mxu0 0
        %364 = vmatmul.mubr.bf16.gmra.mrb[0].mxu0 %v329
        %v365 = vpop.f32.mrb[0].mxu0
        %v366 = vadd.f32 %v303, %v365
        %v367 = vpop.f32.mrb[0].mxu0
        %v368 = vpop.f32.mrb[0].mxu0
        %v369 = vadd.f32 %v303, %v368
        %v370 = vpop.f32.mrb[0].mxu0
        %371 = vdwg.mxu0
        %v372 = vmax.f32 %v366, 0.0
        %v373 = vmax.f32 %v369, 0.0
        %v374 = vpack.c.bf16 %v373, %v372
        %v375 = vld [vmem:[%s3] sm:$0xf]
        %v376 = vld [vmem:[%s3 + $0x4] sm:$0xf]
        %v377 = vld [vmem:[%s3 + $0x8] sm:$0xf]
        %v378 = vld [vmem:[%s3 + $0xc] sm:$0xf]
        %v379 = vld [vmem:[%s3 + $0x10] sm:$0xf]
        %v380 = vld [vmem:[%s3 + $0x14] sm:$0xf]
        %v381 = vld [vmem:[%s3 + $0x18] sm:$0xf]
        %v382 = vld [vmem:[%s3 + $0x1c] sm:$0xf]
        %v383 = vld [vmem:[%s3 + $0x20] sm:$0xf]
        %v384 = vld [vmem:[%s3 + $0x24] sm:$0xf]
        %v385 = vld [vmem:[%s3 + $0x28] sm:$0xf]
        %v386 = vld [vmem:[%s3 + $0x2c] sm:$0xf]
        %v387 = vld [vmem:[%s3 + $0x30] sm:$0xf]
        %v388 = vld [vmem:[%s3 + $0x34] sm:$0xf]
        %v389 = vld [vmem:[%s3 + $0x38] sm:$0xf]
        %v390 = vld [vmem:[%s3 + $0x3c] sm:$0xf]
        %v391 = vlaneseq
        %v392 = vshrl.u32 %v391, 7
        %v393 = vsub.s32 0, %v392
        %v394 = vrot.slane %v291, %v393
        %v411 = vunpack.c.l.b16 %v375
        %v412 = vunpack.c.l.b16 %v376
        %v413 = vunpack.c.l.b16 %v377
        %v414 = vunpack.c.l.b16 %v378
        %v415 = vunpack.c.l.b16 %v379
        %v416 = vunpack.c.l.b16 %v380
        %v417 = vunpack.c.l.b16 %v381
        %v418 = vunpack.c.l.b16 %v382
        %v419 = vunpack.c.l.b16 %v383
        %v420 = vunpack.c.l.b16 %v384
        %v421 = vunpack.c.l.b16 %v385
        %v422 = vunpack.c.l.b16 %v386
        %v423 = vunpack.c.l.b16 %v387
        %v424 = vunpack.c.l.b16 %v388
        %v425 = vunpack.c.l.b16 %v389
        %v426 = vunpack.c.l.b16 %v390
        %v427 = vpack.c.b16 %v412, %v411
        %v428 = vpack.c.b16 %v414, %v413
        %v429 = vpack.c.b16 %v416, %v415
        %v430 = vpack.c.b16 %v418, %v417
        %v431 = vpack.c.b16 %v420, %v419
        %v432 = vpack.c.b16 %v422, %v421
        %v433 = vpack.c.b16 %v424, %v423
        %v434 = vpack.c.b16 %v426, %v425
        %443 = vmatprep.subr.bf16.mxu0 0
        %444 = vmatpush1.bf16.msra.mxu0 %v427
        %445 = vmatprep.subr.bf16.mxu0 0
        %446 = vmatpush1.bf16.msra.mxu0 %v428
        %447 = vmatprep.subr.bf16.mxu0 0
        %448 = vmatpush1.bf16.msra.mxu0 %v429
        %449 = vmatprep.subr.bf16.mxu0 0
        %450 = vmatpush1.bf16.msra.mxu0 %v430
        %451 = vmatprep.subr.bf16.mxu0 0
        %452 = vmatpush1.bf16.msra.mxu0 %v431
        %453 = vmatprep.subr.bf16.mxu0 0
        %454 = vmatpush1.bf16.msra.mxu0 %v432
        %455 = vmatprep.subr.bf16.mxu0 0
        %456 = vmatpush1.bf16.msra.mxu0 %v433
        %457 = vmatprep.subr.bf16.mxu0 0
        %458 = vmatpush1.bf16.msra.mxu0 %v434
        %459 = vmatprep.subr.bf16.mxu0 0
        %460 = vmatpush1.bf16.msra.mxu0 0
        %461 = vmatprep.subr.bf16.mxu0 0
        %462 = vmatpush1.bf16.msra.mxu0 0
        %463 = vmatprep.subr.bf16.mxu0 0
        %464 = vmatpush1.bf16.msra.mxu0 0
        %465 = vmatprep.subr.bf16.mxu0 0
        %466 = vmatpush1.bf16.msra.mxu0 0
        %467 = vmatprep.subr.bf16.mxu0 0
        %468 = vmatpush1.bf16.msra.mxu0 0
        %469 = vmatprep.subr.bf16.mxu0 0
        %470 = vmatpush1.bf16.msra.mxu0 0
        %471 = vmatprep.subr.bf16.mxu0 0
        %472 = vmatpush1.bf16.msra.mxu0 0
        %473 = vmatprep.subr.bf16.mxu0 0
        %474 = vmatpush1.bf16.msra.mxu0 0
        %475 = vmatprep.mubr.bf16.mxu0 0
        %476 = vmatmul.mubr.bf16.gmra.mrb[0].mxu0 %v374
        %v477 = vpop.f32.mrb[0].mxu0
        %v478 = vadd.f32 %v394, %v477
        %v479 = vpop.f32.mrb[0].mxu0
        %v480 = vpop.f32.mrb[0].mxu0
        %v481 = vadd.f32 %v394, %v480
        %v482 = vpop.f32.mrb[0].mxu0
        %483 = vdwg.mxu0
        %vm484 = vcmask 64512
        %v485 = vsel %vm484, %v478, -inf
        %486 = vmax.xlane.f32.xlu0 %v485
        %v487 = vpop.xlane.xlu0 %486
        %v488 = vsel %vm484, %v481, -inf
        %489 = vmax.xlane.f32.xlu0 %v488
        %v490 = vpop.xlane.xlu0 %489
        %v491 = vsub.f32 %v478, %v487
        %v492 = vsub.f32 %v481, %v490
        %v493 = vmul.f32 %v491, 1.442695
        %v494 = vpow.pop %v493
        %v495 = vmul.f32 %v492, 1.442695
        %v496 = vpow.pop %v495
        %v497 = vsel %vm484, %v494, 0.0
        %498 = vadd.xlane.f32.xlu0 %v497
        %v499 = vpop.xlane.xlu0 %498
        %v500 = vsel %vm484, %v496, 0.0
        %501 = vadd.xlane.f32.xlu0 %v500
        %v502 = vpop.xlane.xlu0 %501
        %v503 = vrcp.pop %v499
        %v504 = vrcp.pop %v502
        %v505 = vmul.f32 %v499, %v503
        %v506 = vmul.f32 %v502, %v504
        %v507 = vsub.f32 2.0, %v505
        %v508 = vsub.f32 2.0, %v506
        %v509 = vmul.f32 %v503, %v507
        %v510 = vmul.f32 %v504, %v508
        %v511 = vmul.f32 %v494, %v509
        %v512 = vmul.f32 %v496, %v510
        %s513 = scalar_lea.vmem %s257, 8 [#allocation2]
        %v514 = vld [vmem:[%s513] sm:$0xf]
        %v515 = vld [vmem:[%s513 + $0x4] sm:$0xf]
        %s516 = scalar_lea.vmem %s1, 24
        %v517 = vld [vmem:[%s516] sm:$0xf]
        %v518 = vld [vmem:[%s516 + $0x4] sm:$0xf]
        %v519 = vld [vmem:[%s516 + $0x8] sm:$0xf]
        %v520 = vld [vmem:[%s516 + $0xc] sm:$0xf]
        %v521 = vld [vmem:[%s516 + $0x10] sm:$0xf]
        %v522 = vld [vmem:[%s516 + $0x14] sm:$0xf]
        %v523 = vlaneseq
        %v524 = vshrl.u32 %v523, 7
        %v525 = vsub.s32 1, %v524
        %v526 = vrot.slane %v290, %v525
        %v529 = vunpack.c.l.b16 %v514
        %v530 = vunpack.c.l.b16 %v515
        %v531 = vpack.c.b16 %v530, %v529
        %v538 = vunpack.c.l.b16 %v517
        %v539 = vunpack.c.l.b16 %v518
        %v540 = vunpack.c.l.b16 %v519
        %v541 = vunpack.c.l.b16 %v520
        %v542 = vunpack.c.l.b16 %v521
        %v543 = vunpack.c.l.b16 %v522
        %v544 = vpack.c.b16 %v539, %v538
        %v545 = vpack.c.b16 %v541, %v540
        %v546 = vpack.c.b16 %v543, %v542
        %v551 = vsel %vm327, %v531, 0
        %553 = vmatprep.subr.bf16.mxu0 0
        %554 = vmatpush1.bf16.msra.mxu0 %v544
        %555 = vmatprep.subr.bf16.mxu0 0
        %556 = vmatpush1.bf16.msra.mxu0 %v545
        %557 = vmatprep.subr.bf16.mxu0 0
        %558 = vmatpush1.bf16.msra.mxu0 %v546
        %559 = vmatprep.subr.bf16.mxu0 0
        %560 = vmatpush1.bf16.msra.mxu0 0
        %561 = vmatprep.subr.bf16.mxu0 0
        %562 = vmatpush1.bf16.msra.mxu0 0
        %563 = vmatprep.subr.bf16.mxu0 0
        %564 = vmatpush1.bf16.msra.mxu0 0
        %565 = vmatprep.subr.bf16.mxu0 0
        %566 = vmatpush1.bf16.msra.mxu0 0
        %567 = vmatprep.subr.bf16.mxu0 0
        %568 = vmatpush1.bf16.msra.mxu0 0
        %569 = vmatprep.subr.bf16.mxu0 0
        %570 = vmatpush1.bf16.msra.mxu0 0
        %571 = vmatprep.subr.bf16.mxu0 0
        %572 = vmatpush1.bf16.msra.mxu0 0
        %573 = vmatprep.subr.bf16.mxu0 0
        %574 = vmatpush1.bf16.msra.mxu0 0
        %575 = vmatprep.subr.bf16.mxu0 0
        %576 = vmatpush1.bf16.msra.mxu0 0
        %577 = vmatprep.subr.bf16.mxu0 0
        %578 = vmatpush1.bf16.msra.mxu0 0
        %579 = vmatprep.subr.bf16.mxu0 0
        %580 = vmatpush1.bf16.msra.mxu0 0
        %581 = vmatprep.subr.bf16.mxu0 0
        %582 = vmatpush1.bf16.msra.mxu0 0
        %583 = vmatprep.subr.bf16.mxu0 0
        %584 = vmatpush1.bf16.msra.mxu0 0
        %585 = vmatprep.mubr.bf16.mxu0 0
        %586 = vmatmul.mubr.bf16.gmra.mrb[0].mxu0 %v551
        %v587 = vpop.f32.mrb[0].mxu0
        %v588 = vadd.f32 %v526, %v587
        %v589 = vpop.f32.mrb[0].mxu0
        %v590 = vpop.f32.mrb[0].mxu0
        %v591 = vadd.f32 %v526, %v590
        %v592 = vpop.f32.mrb[0].mxu0
        %593 = vdwg.mxu0
        %v594 = vmax.f32 %v588, 0.0
        %v595 = vmax.f32 %v591, 0.0
        %v596 = vpack.c.bf16 %v595, %v594
        %s597 = scalar_lea.vmem %s3, 64
        %v598 = vld [vmem:[%s597] sm:$0xf]
        %v599 = vld [vmem:[%s597 + $0x4] sm:$0xf]
        %v600 = vld [vmem:[%s597 + $0x8] sm:$0xf]
        %v601 = vld [vmem:[%s597 + $0xc] sm:$0xf]
        %v602 = vld [vmem:[%s597 + $0x10] sm:$0xf]
        %v603 = vld [vmem:[%s597 + $0x14] sm:$0xf]
        %v604 = vld [vmem:[%s597 + $0x18] sm:$0xf]
        %v605 = vld [vmem:[%s597 + $0x1c] sm:$0xf]
        %v606 = vld [vmem:[%s597 + $0x20] sm:$0xf]
        %v607 = vld [vmem:[%s597 + $0x24] sm:$0xf]
        %v608 = vld [vmem:[%s597 + $0x28] sm:$0xf]
        %v609 = vld [vmem:[%s597 + $0x2c] sm:$0xf]
        %v610 = vld [vmem:[%s597 + $0x30] sm:$0xf]
        %v611 = vld [vmem:[%s597 + $0x34] sm:$0xf]
        %v612 = vld [vmem:[%s597 + $0x38] sm:$0xf]
        %v613 = vld [vmem:[%s597 + $0x3c] sm:$0xf]
        %v614 = vlaneseq
        %v615 = vshrl.u32 %v614, 7
        %v616 = vsub.s32 1, %v615
        %v617 = vrot.slane %v291, %v616
        %v634 = vunpack.c.l.b16 %v598
        %v635 = vunpack.c.l.b16 %v599
        %v636 = vunpack.c.l.b16 %v600
        %v637 = vunpack.c.l.b16 %v601
        %v638 = vunpack.c.l.b16 %v602
        %v639 = vunpack.c.l.b16 %v603
        %v640 = vunpack.c.l.b16 %v604
        %v641 = vunpack.c.l.b16 %v605
        %v642 = vunpack.c.l.b16 %v606
        %v643 = vunpack.c.l.b16 %v607
        %v644 = vunpack.c.l.b16 %v608
        %v645 = vunpack.c.l.b16 %v609
        %v646 = vunpack.c.l.b16 %v610
        %v647 = vunpack.c.l.b16 %v611
        %v648 = vunpack.c.l.b16 %v612
        %v649 = vunpack.c.l.b16 %v613
        %v650 = vpack.c.b16 %v635, %v634
        %v651 = vpack.c.b16 %v637, %v636
        %v652 = vpack.c.b16 %v639, %v638
        %v653 = vpack.c.b16 %v641, %v640
        %v654 = vpack.c.b16 %v643, %v642
        %v655 = vpack.c.b16 %v645, %v644
        %v656 = vpack.c.b16 %v647, %v646
        %v657 = vpack.c.b16 %v649, %v648
        %666 = vmatprep.subr.bf16.mxu0 0
        %667 = vmatpush1.bf16.msra.mxu0 %v650
        %668 = vmatprep.subr.bf16.mxu0 0
        %669 = vmatpush1.bf16.msra.mxu0 %v651
        %670 = vmatprep.subr.bf16.mxu0 0
        %671 = vmatpush1.bf16.msra.mxu0 %v652
        %672 = vmatprep.subr.bf16.mxu0 0
        %673 = vmatpush1.bf16.msra.mxu0 %v653
        %674 = vmatprep.subr.bf16.mxu0 0
        %675 = vmatpush1.bf16.msra.mxu0 %v654
        %676 = vmatprep.subr.bf16.mxu0 0
        %677 = vmatpush1.bf16.msra.mxu0 %v655
        %678 = vmatprep.subr.bf16.mxu0 0
        %679 = vmatpush1.bf16.msra.mxu0 %v656
        %680 = vmatprep.subr.bf16.mxu0 0
        %681 = vmatpush1.bf16.msra.mxu0 %v657
        %682 = vmatprep.subr.bf16.mxu0 0
        %683 = vmatpush1.bf16.msra.mxu0 0
        %684 = vmatprep.subr.bf16.mxu0 0
        %685 = vmatpush1.bf16.msra.mxu0 0
        %686 = vmatprep.subr.bf16.mxu0 0
        %687 = vmatpush1.bf16.msra.mxu0 0
        %688 = vmatprep.subr.bf16.mxu0 0
        %689 = vmatpush1.bf16.msra.mxu0 0
        %690 = vmatprep.subr.bf16.mxu0 0
        %691 = vmatpush1.bf16.msra.mxu0 0
        %692 = vmatprep.subr.bf16.mxu0 0
        %693 = vmatpush1.bf16.msra.mxu0 0
        %694 = vmatprep.subr.bf16.mxu0 0
        %695 = vmatpush1.bf16.msra.mxu0 0
        %696 = vmatprep.subr.bf16.mxu0 0
        %697 = vmatpush1.bf16.msra.mxu0 0
        %698 = vmatprep.mubr.bf16.mxu0 0
        %699 = vmatmul.mubr.bf16.gmra.mrb[0].mxu0 %v596
        %v700 = vpop.f32.mrb[0].mxu0
        %v701 = vadd.f32 %v617, %v700
        %v702 = vpop.f32.mrb[0].mxu0
        %v703 = vpop.f32.mrb[0].mxu0
        %v704 = vadd.f32 %v617, %v703
        %v705 = vpop.f32.mrb[0].mxu0
        %706 = vdwg.mxu0
        %v707 = vsel %vm484, %v701, -inf
        %708 = vmax.xlane.f32.xlu0 %v707
        %v709 = vpop.xlane.xlu0 %708
        %v710 = vsel %vm484, %v704, -inf
        %711 = vmax.xlane.f32.xlu0 %v710
        %v712 = vpop.xlane.xlu0 %711
        %v713 = vsub.f32 %v701, %v709
        %v714 = vsub.f32 %v704, %v712
        %v715 = vmul.f32 %v713, 1.442695
        %v716 = vpow.pop %v715
        %v717 = vmul.f32 %v714, 1.442695
        %v718 = vpow.pop %v717
        %v719 = vsel %vm484, %v716, 0.0
        %720 = vadd.xlane.f32.xlu0 %v719
        %v721 = vpop.xlane.xlu0 %720
        %v722 = vsel %vm484, %v718, 0.0
        %723 = vadd.xlane.f32.xlu0 %v722
        %v724 = vpop.xlane.xlu0 %723
        %v725 = vrcp.pop %v721
        %v726 = vrcp.pop %v724
        %v727 = vmul.f32 %v721, %v725
        %v728 = vmul.f32 %v724, %v726
        %v729 = vsub.f32 2.0, %v727
        %v730 = vsub.f32 2.0, %v728
        %v731 = vmul.f32 %v725, %v729
        %v732 = vmul.f32 %v726, %v730
        %v733 = vmul.f32 %v716, %v731
        %v734 = vmul.f32 %v718, %v732
        %v735 = vadd.f32 %v511, %v733
        %v736 = vadd.f32 %v512, %v734
        %s737 = scalar_lea.vmem %s257, 16 [#allocation2]
        %v738 = vld [vmem:[%s737] sm:$0xf]
        %v739 = vld [vmem:[%s737 + $0x4] sm:$0xf]
        %s740 = scalar_lea.vmem %s1, 48
        %v741 = vld [vmem:[%s740] sm:$0xf]
        %v742 = vld [vmem:[%s740 + $0x4] sm:$0xf]
        %v743 = vld [vmem:[%s740 + $0x8] sm:$0xf]
        %v744 = vld [vmem:[%s740 + $0xc] sm:$0xf]
        %v745 = vld [vmem:[%s740 + $0x10] sm:$0xf]
        %v746 = vld [vmem:[%s740 + $0x14] sm:$0xf]
        %v747 = vlaneseq
        %v748 = vshrl.u32 %v747, 7
        %v749 = vsub.s32 2, %v748
        %v750 = vrot.slane %v290, %v749
        %v753 = vunpack.c.l.b16 %v738
        %v754 = vunpack.c.l.b16 %v739
        %v755 = vpack.c.b16 %v754, %v753
        %v762 = vunpack.c.l.b16 %v741
        %v763 = vunpack.c.l.b16 %v742
        %v764 = vunpack.c.l.b16 %v743
        %v765 = vunpack.c.l.b16 %v744
        %v766 = vunpack.c.l.b16 %v745
        %v767 = vunpack.c.l.b16 %v746
        %v768 = vpack.c.b16 %v763, %v762
        %v769 = vpack.c.b16 %v765, %v764
        %v770 = vpack.c.b16 %v767, %v766
        %v775 = vsel %vm327, %v755, 0
        %777 = vmatprep.subr.bf16.mxu0 0
        %778 = vmatpush1.bf16.msra.mxu0 %v768
        %779 = vmatprep.subr.bf16.mxu0 0
        %780 = vmatpush1.bf16.msra.mxu0 %v769
        %781 = vmatprep.subr.bf16.mxu0 0
        %782 = vmatpush1.bf16.msra.mxu0 %v770
        %783 = vmatprep.subr.bf16.mxu0 0
        %784 = vmatpush1.bf16.msra.mxu0 0
        %785 = vmatprep.subr.bf16.mxu0 0
        %786 = vmatpush1.bf16.msra.mxu0 0
        %787 = vmatprep.subr.bf16.mxu0 0
        %788 = vmatpush1.bf16.msra.mxu0 0
        %789 = vmatprep.subr.bf16.mxu0 0
        %790 = vmatpush1.bf16.msra.mxu0 0
        %791 = vmatprep.subr.bf16.mxu0 0
        %792 = vmatpush1.bf16.msra.mxu0 0
        %793 = vmatprep.subr.bf16.mxu0 0
        %794 = vmatpush1.bf16.msra.mxu0 0
        %795 = vmatprep.subr.bf16.mxu0 0
        %796 = vmatpush1.bf16.msra.mxu0 0
        %797 = vmatprep.subr.bf16.mxu0 0
        %798 = vmatpush1.bf16.msra.mxu0 0
        %799 = vmatprep.subr.bf16.mxu0 0
        %800 = vmatpush1.bf16.msra.mxu0 0
        %801 = vmatprep.subr.bf16.mxu0 0
        %802 = vmatpush1.bf16.msra.mxu0 0
        %803 = vmatprep.subr.bf16.mxu0 0
        %804 = vmatpush1.bf16.msra.mxu0 0
        %805 = vmatprep.subr.bf16.mxu0 0
        %806 = vmatpush1.bf16.msra.mxu0 0
        %807 = vmatprep.subr.bf16.mxu0 0
        %808 = vmatpush1.bf16.msra.mxu0 0
        %809 = vmatprep.mubr.bf16.mxu0 0
        %810 = vmatmul.mubr.bf16.gmra.mrb[0].mxu0 %v775
        %v811 = vpop.f32.mrb[0].mxu0
        %v812 = vadd.f32 %v750, %v811
        %v813 = vpop.f32.mrb[0].mxu0
        %v814 = vpop.f32.mrb[0].mxu0
        %v815 = vadd.f32 %v750, %v814
        %v816 = vpop.f32.mrb[0].mxu0
        %817 = vdwg.mxu0
        %v818 = vmax.f32 %v812, 0.0
        %v819 = vmax.f32 %v815, 0.0
        %v820 = vpack.c.bf16 %v819, %v818
        %s821 = scalar_lea.vmem %s3, 128
        %v822 = vld [vmem:[%s821] sm:$0xf]
        %v823 = vld [vmem:[%s821 + $0x4] sm:$0xf]
        %v824 = vld [vmem:[%s821 + $0x8] sm:$0xf]
        %v825 = vld [vmem:[%s821 + $0xc] sm:$0xf]
        %v826 = vld [vmem:[%s821 + $0x10] sm:$0xf]
        %v827 = vld [vmem:[%s821 + $0x14] sm:$0xf]
        %v828 = vld [vmem:[%s821 + $0x18] sm:$0xf]
        %v829 = vld [vmem:[%s821 + $0x1c] sm:$0xf]
        %v830 = vld [vmem:[%s821 + $0x20] sm:$0xf]
        %v831 = vld [vmem:[%s821 + $0x24] sm:$0xf]
        %v832 = vld [vmem:[%s821 + $0x28] sm:$0xf]
        %v833 = vld [vmem:[%s821 + $0x2c] sm:$0xf]
        %v834 = vld [vmem:[%s821 + $0x30] sm:$0xf]
        %v835 = vld [vmem:[%s821 + $0x34] sm:$0xf]
        %v836 = vld [vmem:[%s821 + $0x38] sm:$0xf]
        %v837 = vld [vmem:[%s821 + $0x3c] sm:$0xf]
        %v838 = vlaneseq
        %v839 = vshrl.u32 %v838, 7
        %v840 = vsub.s32 2, %v839
        %v841 = vrot.slane %v291, %v840
        %v858 = vunpack.c.l.b16 %v822
        %v859 = vunpack.c.l.b16 %v823
        %v860 = vunpack.c.l.b16 %v824
        %v861 = vunpack.c.l.b16 %v825
        %v862 = vunpack.c.l.b16 %v826
        %v863 = vunpack.c.l.b16 %v827
        %v864 = vunpack.c.l.b16 %v828
        %v865 = vunpack.c.l.b16 %v829
        %v866 = vunpack.c.l.b16 %v830
        %v867 = vunpack.c.l.b16 %v831
        %v868 = vunpack.c.l.b16 %v832
        %v869 = vunpack.c.l.b16 %v833
        %v870 = vunpack.c.l.b16 %v834
        %v871 = vunpack.c.l.b16 %v835
        %v872 = vunpack.c.l.b16 %v836
        %v873 = vunpack.c.l.b16 %v837
        %v874 = vpack.c.b16 %v859, %v858
        %v875 = vpack.c.b16 %v861, %v860
        %v876 = vpack.c.b16 %v863, %v862
        %v877 = vpack.c.b16 %v865, %v864
        %v878 = vpack.c.b16 %v867, %v866
        %v879 = vpack.c.b16 %v869, %v868
        %v880 = vpack.c.b16 %v871, %v870
        %v881 = vpack.c.b16 %v873, %v872
        %890 = vmatprep.subr.bf16.mxu0 0
        %891 = vmatpush1.bf16.msra.mxu0 %v874
        %892 = vmatprep.subr.bf16.mxu0 0
        %893 = vmatpush1.bf16.msra.mxu0 %v875
        %894 = vmatprep.subr.bf16.mxu0 0
        %895 = vmatpush1.bf16.msra.mxu0 %v876
        %896 = vmatprep.subr.bf16.mxu0 0
        %897 = vmatpush1.bf16.msra.mxu0 %v877
        %898 = vmatprep.subr.bf16.mxu0 0
        %899 = vmatpush1.bf16.msra.mxu0 %v878
        %900 = vmatprep.subr.bf16.mxu0 0
        %901 = vmatpush1.bf16.msra.mxu0 %v879
        %902 = vmatprep.subr.bf16.mxu0 0
        %903 = vmatpush1.bf16.msra.mxu0 %v880
        %904 = vmatprep.subr.bf16.mxu0 0
        %905 = vmatpush1.bf16.msra.mxu0 %v881
        %906 = vmatprep.subr.bf16.mxu0 0
        %907 = vmatpush1.bf16.msra.mxu0 0
        %908 = vmatprep.subr.bf16.mxu0 0
        %909 = vmatpush1.bf16.msra.mxu0 0
        %910 = vmatprep.subr.bf16.mxu0 0
        %911 = vmatpush1.bf16.msra.mxu0 0
        %912 = vmatprep.subr.bf16.mxu0 0
        %913 = vmatpush1.bf16.msra.mxu0 0
        %914 = vmatprep.subr.bf16.mxu0 0
        %915 = vmatpush1.bf16.msra.mxu0 0
        %916 = vmatprep.subr.bf16.mxu0 0
        %917 = vmatpush1.bf16.msra.mxu0 0
        %918 = vmatprep.subr.bf16.mxu0 0
        %919 = vmatpush1.bf16.msra.mxu0 0
        %920 = vmatprep.subr.bf16.mxu0 0
        %921 = vmatpush1.bf16.msra.mxu0 0
        %922 = vmatprep.mubr.bf16.mxu0 0
        %923 = vmatmul.mubr.bf16.gmra.mrb[0].mxu0 %v820
        %v924 = vpop.f32.mrb[0].mxu0
        %v925 = vadd.f32 %v841, %v924
        %v926 = vpop.f32.mrb[0].mxu0
        %v927 = vpop.f32.mrb[0].mxu0
        %v928 = vadd.f32 %v841, %v927
        %v929 = vpop.f32.mrb[0].mxu0
        %930 = vdwg.mxu0
        %v931 = vsel %vm484, %v925, -inf
        %932 = vmax.xlane.f32.xlu0 %v931
        %v933 = vpop.xlane.xlu0 %932
        %v934 = vsel %vm484, %v928, -inf
        %935 = vmax.xlane.f32.xlu0 %v934
        %v936 = vpop.xlane.xlu0 %935
        %v937 = vsub.f32 %v925, %v933
        %v938 = vsub.f32 %v928, %v936
        %v939 = vmul.f32 %v937, 1.442695
        %v940 = vpow.pop %v939
        %v941 = vmul.f32 %v938, 1.442695
        %v942 = vpow.pop %v941
        %v943 = vsel %vm484, %v940, 0.0
        %944 = vadd.xlane.f32.xlu0 %v943
        %v945 = vpop.xlane.xlu0 %944
        %v946 = vsel %vm484, %v942, 0.0
        %947 = vadd.xlane.f32.xlu0 %v946
        %v948 = vpop.xlane.xlu0 %947
        %v949 = vrcp.pop %v945
        %v950 = vrcp.pop %v948
        %v951 = vmul.f32 %v945, %v949
        %v952 = vmul.f32 %v948, %v950
        %v953 = vsub.f32 2.0, %v951
        %v954 = vsub.f32 2.0, %v952
        %v955 = vmul.f32 %v949, %v953
        %v956 = vmul.f32 %v950, %v954
        %v957 = vmul.f32 %v940, %v955
        %v958 = vmul.f32 %v942, %v956
        %v959 = vadd.f32 %v735, %v957
        %v960 = vadd.f32 %v736, %v958
        %v961 = vmul.f32 %v959, 0.33333334
        %v962 = vmul.f32 %v960, 0.33333334
        %v963 = vlog2.pop %v961
        %v964 = vmul.f32 %v963, 0.6931472
        %v965 = vlog2.pop %v962
        %v966 = vmul.f32 %v965, 0.6931472
        %967 = vst.msk [vmem:[%s287] sm:$0xff] %vm484, %v964
        %968 = vst.msk [vmem:[%s287 + $0x8] sm:$0xff] %vm484, %v966
        %s969 = smul.u32 2, %s16
        %p970 = scmp.lt.s32.totalorder %s969, 3
        %s971 = scalar_select %p970, %s969, 3
        %s972 = smul.addr %s971, 8
        %s973 = scalar_lea.vmem %s5, %s972
        // Predicated region
        $region82: #{tpu_custom_call.1} parent=76 // pred_check
          %p974 = pneg %p144
        $region83: #{tpu_custom_call.1} parent=76 // pred_check_branch
          %976 = sbr.rel (%p974) target = $region85
        $region84: #{tpu_custom_call.1} parent=76 // pred_region
          %s977 = smul.u32 2, %s16
        $region85: #{tpu_custom_call.1} parent=76 // pred_fallthru
          _
      $region77: #{tpu_custom_call.1} parent=5 // pred_fallthru
        _
      %p978 = scmp.le.s32.totalorder 2, %s11
      // Predicated region
      $region86: #{tpu_custom_call.1} parent=5 // pred_check
        %p979 = pneg %p978
      $region87: #{tpu_custom_call.1} parent=5 // pred_check_branch
        %981 = sbr.rel (%p979) target = $region89
      $region88: #{tpu_custom_call.1} parent=5 // pred_region
        %s982 = ssub.s32 %s11, 2
        // Predicated region
        $region90: #{tpu_custom_call.1} parent=88 // pred_check
          %p983 = pneg %p150
        $region91: #{tpu_custom_call.1} parent=88 // pred_check_branch
          %985 = sbr.rel (%p983) target = $region93
        $region92: #{tpu_custom_call.1} parent=88 // pred_region
          %s986 = smul.u32 2, %s17
          %p987 = scmp.lt.s32.totalorder %s986, 3
          %s988 = scalar_select %p987, %s986, 3
          %s989 = smul.addr %s988, 8
          %s990 = scalar_lea.vmem %s5, %s989
        $region93: #{tpu_custom_call.1} parent=88 // pred_fallthru
          _
      $region89: #{tpu_custom_call.1} parent=5 // pred_fallthru
        _
    $region6: #{tpu_custom_call.1} parent=1 // loop_footer
      %s15 = sadd.s32 1, %s11
    $region7: #{tpu_custom_call.1} parent=1 // loop_footer_branch
      %10 = sbr.rel target = $region3
    $region8: #{tpu_custom_call.1} parent=1 // loop_exit
      _

</llo_original>
